<compile_context>
chip_gen: v6e
topology: v6e:2x2x1
jax: 0.10.0
libtpu: 0.0.40
codegen_flags: <defaults>
</compile_context>

<pallas_src>
import functools

import jax
import jax.numpy as jnp
from jax.experimental import pallas as pl
from jax.experimental.pallas import tpu as pltpu

H_N = 40       # hidden width (h_n_T)
INPUT_N = 2    # (x, y) coordinates
OUTPUT_N = 1   # temperature T
N_LINEAR = 10  # total linear layers


@functools.lru_cache(maxsize=1)
def _num_tensorcores():
    """Best-effort TensorCore count (v7x=2, v5e/v6e=1). Safe fallback = 1."""
    try:
        info = pltpu.get_tpu_info()
        for attr in ("tensorcore_count", "num_tensorcores", "num_cores",
                     "core_count"):
            v = getattr(info, attr, None)
            if isinstance(v, int) and v > 0:
                return v
    except Exception:
        pass
    return 1


def _swish(x):
    # swish(x) = x * sigmoid(x) = x * 0.5 * (1 + tanh(x/2)).
    # Exact identity; a single EUP transcendental (tanh) per element instead
    # of exp + reciprocal, with the extra mul/add riding the idle VALU slot.
    return x * (0.5 + 0.5 * jnp.tanh(0.5 * x))


def _pinn_t_kernel(x_ref, w0_ref, wr_ref, wl_ref, b_ref, o_ref, *, matmul_dtype):
    """Whole 10-layer MLP fused; activations feature-major (feat, TILE_B).

    x_ref : (2, TB)        f32 input coordinates, batch on the lane axis
    w0_ref: (40, 2)        f32 first-layer weight (K=2 layer done on the VPU)
    wr_ref: (8, 40, 40)    hidden-layer weights (layers 1..8), matmul_dtype
    wl_ref: (40, 1)        f32 final-layer weight as a column (VPU reduce)
    b_ref : (10, 40, 1)    f32 biases (layer-9 bias sits in row 0 of entry 9)
    o_ref : (1, TB)        lane-dense output tile (unmasked full-width stores)
    """
    x = x_ref[...]                                             # (2, TB) f32
    w0 = w0_ref[...]                                           # (40, 2) f32

    # Layer 0 (in=2): a 2-wide contraction wastes the MXU; do it on the VPU.
    h = w0[:, 0:1] * x[0:1, :] + w0[:, 1:2] * x[1:2, :] + b_ref[0]
    h = _swish(h)                                              # (40, TB) f32

    # Hidden layers 1..8: (40,40) @ (40,TB) on the MXU with f32 accumulation.
    # TODO(synk): bundle-verify the MXU stationing for W @ h (weight-stationary
    # schedule / batch-major A-B) before further MXU tuning.
    for layer in range(1, N_LINEAR - 1):
        h = (jnp.dot(wr_ref[layer - 1], h.astype(matmul_dtype),
                     preferred_element_type=jnp.float32)
             + b_ref[layer])
        h = _swish(h)

    # Layer 9 (40 -> 1): VPU multiply + sublane reduction instead of a
    # zero-padded (40,40) matmul (97.5% of that matmul multiplied zeros).
    o = jnp.sum(h * wl_ref[...], axis=0, keepdims=True) + b_ref[N_LINEAR - 1, 0:1, :]
    o_ref[...] = o.astype(o_ref.dtype)


def init_pinn_t_params(key, dtype=jnp.float32):
    """PyTorch-style init: W (out, in), b (out,), uniform +/- 1/sqrt(fan_in)."""
    dims = [INPUT_N] + [H_N] * (N_LINEAR - 1) + [OUTPUT_N]
    params = []
    for i in range(N_LINEAR):
        fan_in, fan_out = dims[i], dims[i + 1]
        key, kw, kb = jax.random.split(key, 3)
        bound = 1.0 / (fan_in ** 0.5)
        w = jax.random.uniform(kw, (fan_out, fan_in), dtype, -bound, bound)
        b = jax.random.uniform(kb, (fan_out,), dtype, -bound, bound)
        params.append((w, b))
    return params


def _pack_params(params, matmul_dtype):
    """Pack the 20 small tensors into 4 resident buffers."""
    w0 = params[0][0].astype(jnp.float32)                      # (40, 2)
    # Hidden layers 1..8 stacked; cast to the matmul input dtype (bf16/f32).
    w_hidden = jnp.stack(
        [params[i][0].astype(jnp.float32) for i in range(1, N_LINEAR - 1)]
    ).astype(matmul_dtype)                                     # (8, 40, 40)
    # Last layer (1, 40) -> column (40, 1), kept f32 for the VPU reduce.
    w_last = params[N_LINEAR - 1][0].astype(jnp.float32).reshape(H_N, 1)

    biases = []
    for layer in range(N_LINEAR):
        b = params[layer][1].astype(jnp.float32)
        if b.shape[0] < H_N:                                   # last-layer bias
            b = jnp.pad(b, (0, H_N - b.shape[0]))
        biases.append(b.reshape(H_N, 1))
    b_packed = jnp.stack(biases)                               # (10, 40, 1)
    return w0, w_hidden, w_last, b_packed


@functools.partial(jax.jit, static_argnames=("tile_b", "use_bf16"))
def pinn_t_forward(x, params, tile_b=4096, use_bf16=True):
    """x: (N, 2) -> (N, 1)."""
    n = x.shape[0]
    matmul_dtype = jnp.bfloat16 if use_bf16 else jnp.float32

    # Lane-aligned batch tiling. Large tiles amortize the ~0.35 us/step grid
    # overhead; capped at 8192 so an f32 tile stays well under v5e's 16 MiB
    # scoped-VMEM default (and v7x's 32 MiB) without touching vmem_limit_bytes.
    n128 = pl.cdiv(n, 128) * 128
    tb = max(128, (min(int(tile_b), 8192, n128) // 128) * 128)
    # Only force >= 2 grid steps on multi-TC chips (v7x megacore sharding);
    # on single-TC v5e/v6e the grid is serial and splitting is pure overhead.
    if _num_tensorcores() >= 2 and n128 // tb < 2 and n128 >= 256:
        tb = max(128, ((n128 // 2) // 128) * 128)
    n_pad = pl.cdiv(n, tb) * tb
    grid = (n_pad // tb,)

    # Feature-major input slab: (2, n_pad), batch on the lane axis.
    x_t = jnp.pad(x.astype(jnp.float32).T, ((0, 0), (0, n_pad - n)))
    w0, w_hidden, w_last, b_packed = _pack_params(params, matmul_dtype)

    # Advisory cost estimate for XLA scheduling around the custom call.
    flops = n_pad * (2 * INPUT_N * H_N
                     + 2 * (N_LINEAR - 2) * H_N * H_N
                     + 2 * H_N * OUTPUT_N)
    transc = (N_LINEAR - 1) * H_N * n_pad          # one tanh per Swish element
    param_bytes = (w0.size * 4 + w_hidden.size * w_hidden.dtype.itemsize
                   + w_last.size * 4 + b_packed.size * 4)
    bytes_accessed = 4 * (x_t.size + n_pad * OUTPUT_N) + param_bytes

    out = pl.pallas_call(
        functools.partial(_pinn_t_kernel, matmul_dtype=matmul_dtype),
        out_shape=jax.ShapeDtypeStruct((OUTPUT_N, n_pad), jnp.float32),
        grid_spec=pltpu.PrefetchScalarGridSpec(
            num_scalar_prefetch=0,
            grid=grid,
            in_specs=[
                pl.BlockSpec((INPUT_N, tb), lambda i: (0, i)),       # x tile
                pl.BlockSpec(w0.shape, lambda i: (0, 0)),            # resident
                pl.BlockSpec(w_hidden.shape, lambda i: (0, 0, 0)),   # resident
                pl.BlockSpec(w_last.shape, lambda i: (0, 0)),        # resident
                pl.BlockSpec(b_packed.shape, lambda i: (0, 0, 0)),   # resident
            ],
            out_specs=pl.BlockSpec((OUTPUT_N, tb), lambda i: (0, i)),  # lane-dense
        ),
        compiler_params=pltpu.CompilerParams(
            dimension_semantics=("parallel",),
        ),
        cost_estimate=pl.CostEstimate(
            flops=int(flops),
            transcendentals=int(transc),
            bytes_accessed=int(bytes_accessed),
        ),
    )(x_t, w0, w_hidden, w_last, b_packed)

    # Back to the module's (N, 1) batch-major output.
    return out[:, :n].T.astype(x.dtype)


def pinn_t_reference(x, params):
    """Pure-JAX reference (PyTorch semantics: y = x @ W.T + b)."""
    h = x.astype(jnp.float32)
    for i, (w, b) in enumerate(params):
        h = h @ w.astype(jnp.float32).T + b.astype(jnp.float32)
        if i < N_LINEAR - 1:
            h = h * jax.nn.sigmoid(h)
    return h.astype(x.dtype)


if __name__ == "__main__":
    key = jax.random.PRNGKey(0)
    k_params, k_x = jax.random.split(key)

    params = init_pinn_t_params(k_params)

    # Small batch of 2D collocation points (300 -> one 384-wide lane tile on
    # single-TC chips, two tiles on v7x).
    n_points = 300
    x = jax.random.uniform(k_x, (n_points, INPUT_N), jnp.float32)

    ref = pinn_t_reference(x, params)

    # Exact f32-matmul path: tight correctness check.
    out_f32 = pinn_t_forward(x, params, use_bf16=False)
    jax.block_until_ready(out_f32)
    assert out_f32.shape == (n_points, OUTPUT_N), out_f32.shape
    assert jnp.allclose(out_f32, ref, atol=1e-4, rtol=1e-4), (
        float(jnp.max(jnp.abs(out_f32 - ref))))

    # Default fast path (bf16 MXU inputs, f32 accumulation): looser check.
    out = pinn_t_forward(x, params)
    jax.block_until_ready(out)
    assert out.shape == (n_points, OUTPUT_N), out.shape
    assert jnp.allclose(out, ref, atol=5e-2, rtol=5e-2), (
        float(jnp.max(jnp.abs(out - ref))))

    print("KERNEL_OK")
</pallas_src>

<mosaic_0001>
module attributes {stable_mosaic.version = 11 : i64} {
  func.func @_pinn_t_kernel(%arg0: i32, %arg1: memref<2x384xf32, #tpu.memory_space<vmem>>, %arg2: memref<40x2xf32, #tpu.memory_space<vmem>>, %arg3: memref<8x40x40xf32, #tpu.memory_space<vmem>>, %arg4: memref<40x1xf32, #tpu.memory_space<vmem>>, %arg5: memref<10x40x1xf32, #tpu.memory_space<vmem>>, %arg6: memref<1x384xf32, #tpu.memory_space<vmem>>) attributes {dimension_semantics = [#tpu.dimension_semantics<parallel>], iteration_bounds = array<i64: 1>, scalar_prefetch = 0 : i64, scratch_operands = 0 : i64, tpu.core_type = #tpu.core_type<tc>, window_params = [{transform_indices = @transform_0, window_bounds = array<i64: 2, 384>}, {pipeline_mode = #tpu.pipeline_mode<synchronous>, transform_indices = @transform_1, window_bounds = array<i64: 40, 2>}, {pipeline_mode = #tpu.pipeline_mode<synchronous>, transform_indices = @transform_2, window_bounds = array<i64: 8, 40, 40>}, {pipeline_mode = #tpu.pipeline_mode<synchronous>, transform_indices = @transform_3, window_bounds = array<i64: 40, 1>}, {pipeline_mode = #tpu.pipeline_mode<synchronous>, transform_indices = @transform_4, window_bounds = array<i64: 10, 40, 1>}, {transform_indices = @transform_5, window_bounds = array<i64: 1, 384>}]} {
    %c0 = arith.constant 0 : index
    %c0_0 = arith.constant 0 : index
    %0 = vector.load %arg1[%c0, %c0_0] : memref<2x384xf32, #tpu.memory_space<vmem>>, vector<2x384xf32>
    %c0_1 = arith.constant 0 : index
    %c0_2 = arith.constant 0 : index
    %1 = vector.load %arg2[%c0_1, %c0_2] : memref<40x2xf32, #tpu.memory_space<vmem>>, vector<40x2xf32>
    %2 = vector.extract_strided_slice %1 {offsets = [0, 0], sizes = [40, 1], strides = [1, 1]} : vector<40x2xf32> to vector<40x1xf32>
    %3 = vector.extract_strided_slice %0 {offsets = [0, 0], sizes = [1, 384], strides = [1, 1]} : vector<2x384xf32> to vector<1x384xf32>
    %4 = vector.broadcast %2 : vector<40x1xf32> to vector<40x384xf32>
    %5 = vector.broadcast %3 : vector<1x384xf32> to vector<40x384xf32>
    %6 = arith.mulf %4, %5 : vector<40x384xf32>
    %7 = vector.extract_strided_slice %1 {offsets = [0, 1], sizes = [40, 1], strides = [1, 1]} : vector<40x2xf32> to vector<40x1xf32>
    %8 = vector.extract_strided_slice %0 {offsets = [1, 0], sizes = [1, 384], strides = [1, 1]} : vector<2x384xf32> to vector<1x384xf32>
    %9 = vector.broadcast %7 : vector<40x1xf32> to vector<40x384xf32>
    %10 = vector.broadcast %8 : vector<1x384xf32> to vector<40x384xf32>
    %11 = arith.mulf %9, %10 : vector<40x384xf32>
    %12 = arith.addf %6, %11 : vector<40x384xf32>
    %c0_3 = arith.constant 0 : index
    %c0_4 = arith.constant 0 : index
    %c0_5 = arith.constant 0 : index
    %13 = vector.load %arg5[%c0_3, %c0_4, %c0_5] : memref<10x40x1xf32, #tpu.memory_space<vmem>>, vector<1x40x1xf32>
    %14 = vector.shape_cast %13 : vector<1x40x1xf32> to vector<40x1xf32>
    %15 = vector.broadcast %14 : vector<40x1xf32> to vector<40x384xf32>
    %16 = arith.addf %12, %15 : vector<40x384xf32>
    %cst = arith.constant 5.000000e-01 : f32
    %17 = vector.broadcast %cst : f32 to vector<40x384xf32>
    %18 = arith.mulf %17, %16 : vector<40x384xf32>
    %19 = math.tanh %18 : vector<40x384xf32>
    %cst_6 = arith.constant 5.000000e-01 : f32
    %20 = vector.broadcast %cst_6 : f32 to vector<40x384xf32>
    %21 = arith.mulf %20, %19 : vector<40x384xf32>
    %cst_7 = arith.constant 5.000000e-01 : f32
    %22 = vector.broadcast %cst_7 : f32 to vector<40x384xf32>
    %23 = arith.addf %22, %21 : vector<40x384xf32>
    %24 = arith.mulf %16, %23 : vector<40x384xf32>
    %c0_8 = arith.constant 0 : index
    %c0_9 = arith.constant 0 : index
    %c0_10 = arith.constant 0 : index
    %25 = vector.load %arg3[%c0_8, %c0_9, %c0_10] : memref<8x40x40xf32, #tpu.memory_space<vmem>>, vector<1x40x40xf32>
    %26 = vector.shape_cast %25 : vector<1x40x40xf32> to vector<40x40xf32>
    %cst_11 = arith.constant dense<0.000000e+00> : vector<40x384xf32>
    %27 = tpu.matmul %26, %24, %cst_11 {dimension_numbers = #tpu.dot_dimension_numbers<[1], [0], [0], [1], [0, 0, 1, 1], [], []>} : vector<40x40xf32>, vector<40x384xf32>, vector<40x384xf32> -> vector<40x384xf32>
    %c1 = arith.constant 1 : index
    %c0_12 = arith.constant 0 : index
    %c0_13 = arith.constant 0 : index
    %28 = vector.load %arg5[%c1, %c0_12, %c0_13] : memref<10x40x1xf32, #tpu.memory_space<vmem>>, vector<1x40x1xf32>
    %29 = vector.shape_cast %28 : vector<1x40x1xf32> to vector<40x1xf32>
    %30 = vector.broadcast %29 : vector<40x1xf32> to vector<40x384xf32>
    %31 = arith.addf %27, %30 : vector<40x384xf32>
    %cst_14 = arith.constant 5.000000e-01 : f32
    %32 = vector.broadcast %cst_14 : f32 to vector<40x384xf32>
    %33 = arith.mulf %32, %31 : vector<40x384xf32>
    %34 = math.tanh %33 : vector<40x384xf32>
    %cst_15 = arith.constant 5.000000e-01 : f32
    %35 = vector.broadcast %cst_15 : f32 to vector<40x384xf32>
    %36 = arith.mulf %35, %34 : vector<40x384xf32>
    %cst_16 = arith.constant 5.000000e-01 : f32
    %37 = vector.broadcast %cst_16 : f32 to vector<40x384xf32>
    %38 = arith.addf %37, %36 : vector<40x384xf32>
    %39 = arith.mulf %31, %38 : vector<40x384xf32>
    %c1_17 = arith.constant 1 : index
    %c0_18 = arith.constant 0 : index
    %c0_19 = arith.constant 0 : index
    %40 = vector.load %arg3[%c1_17, %c0_18, %c0_19] : memref<8x40x40xf32, #tpu.memory_space<vmem>>, vector<1x40x40xf32>
    %41 = vector.shape_cast %40 : vector<1x40x40xf32> to vector<40x40xf32>
    %cst_20 = arith.constant dense<0.000000e+00> : vector<40x384xf32>
    %42 = tpu.matmul %41, %39, %cst_20 {dimension_numbers = #tpu.dot_dimension_numbers<[1], [0], [0], [1], [0, 0, 1, 1], [], []>} : vector<40x40xf32>, vector<40x384xf32>, vector<40x384xf32> -> vector<40x384xf32>
    %c2 = arith.constant 2 : index
    %c0_21 = arith.constant 0 : index
    %c0_22 = arith.constant 0 : index
    %43 = vector.load %arg5[%c2, %c0_21, %c0_22] : memref<10x40x1xf32, #tpu.memory_space<vmem>>, vector<1x40x1xf32>
    %44 = vector.shape_cast %43 : vector<1x40x1xf32> to vector<40x1xf32>
    %45 = vector.broadcast %44 : vector<40x1xf32> to vector<40x384xf32>
    %46 = arith.addf %42, %45 : vector<40x384xf32>
    %cst_23 = arith.constant 5.000000e-01 : f32
    %47 = vector.broadcast %cst_23 : f32 to vector<40x384xf32>
    %48 = arith.mulf %47, %46 : vector<40x384xf32>
    %49 = math.tanh %48 : vector<40x384xf32>
    %cst_24 = arith.constant 5.000000e-01 : f32
    %50 = vector.broadcast %cst_24 : f32 to vector<40x384xf32>
    %51 = arith.mulf %50, %49 : vector<40x384xf32>
    %cst_25 = arith.constant 5.000000e-01 : f32
    %52 = vector.broadcast %cst_25 : f32 to vector<40x384xf32>
    %53 = arith.addf %52, %51 : vector<40x384xf32>
    %54 = arith.mulf %46, %53 : vector<40x384xf32>
    %c2_26 = arith.constant 2 : index
    %c0_27 = arith.constant 0 : index
    %c0_28 = arith.constant 0 : index
    %55 = vector.load %arg3[%c2_26, %c0_27, %c0_28] : memref<8x40x40xf32, #tpu.memory_space<vmem>>, vector<1x40x40xf32>
    %56 = vector.shape_cast %55 : vector<1x40x40xf32> to vector<40x40xf32>
    %cst_29 = arith.constant dense<0.000000e+00> : vector<40x384xf32>
    %57 = tpu.matmul %56, %54, %cst_29 {dimension_numbers = #tpu.dot_dimension_numbers<[1], [0], [0], [1], [0, 0, 1, 1], [], []>} : vector<40x40xf32>, vector<40x384xf32>, vector<40x384xf32> -> vector<40x384xf32>
    %c3 = arith.constant 3 : index
    %c0_30 = arith.constant 0 : index
    %c0_31 = arith.constant 0 : index
    %58 = vector.load %arg5[%c3, %c0_30, %c0_31] : memref<10x40x1xf32, #tpu.memory_space<vmem>>, vector<1x40x1xf32>
    %59 = vector.shape_cast %58 : vector<1x40x1xf32> to vector<40x1xf32>
    %60 = vector.broadcast %59 : vector<40x1xf32> to vector<40x384xf32>
    %61 = arith.addf %57, %60 : vector<40x384xf32>
    %cst_32 = arith.constant 5.000000e-01 : f32
    %62 = vector.broadcast %cst_32 : f32 to vector<40x384xf32>
    %63 = arith.mulf %62, %61 : vector<40x384xf32>
    %64 = math.tanh %63 : vector<40x384xf32>
    %cst_33 = arith.constant 5.000000e-01 : f32
    %65 = vector.broadcast %cst_33 : f32 to vector<40x384xf32>
    %66 = arith.mulf %65, %64 : vector<40x384xf32>
    %cst_34 = arith.constant 5.000000e-01 : f32
    %67 = vector.broadcast %cst_34 : f32 to vector<40x384xf32>
    %68 = arith.addf %67, %66 : vector<40x384xf32>
    %69 = arith.mulf %61, %68 : vector<40x384xf32>
    %c3_35 = arith.constant 3 : index
    %c0_36 = arith.constant 0 : index
    %c0_37 = arith.constant 0 : index
    %70 = vector.load %arg3[%c3_35, %c0_36, %c0_37] : memref<8x40x40xf32, #tpu.memory_space<vmem>>, vector<1x40x40xf32>
    %71 = vector.shape_cast %70 : vector<1x40x40xf32> to vector<40x40xf32>
    %cst_38 = arith.constant dense<0.000000e+00> : vector<40x384xf32>
    %72 = tpu.matmul %71, %69, %cst_38 {dimension_numbers = #tpu.dot_dimension_numbers<[1], [0], [0], [1], [0, 0, 1, 1], [], []>} : vector<40x40xf32>, vector<40x384xf32>, vector<40x384xf32> -> vector<40x384xf32>
    %c4 = arith.constant 4 : index
    %c0_39 = arith.constant 0 : index
    %c0_40 = arith.constant 0 : index
    %73 = vector.load %arg5[%c4, %c0_39, %c0_40] : memref<10x40x1xf32, #tpu.memory_space<vmem>>, vector<1x40x1xf32>
    %74 = vector.shape_cast %73 : vector<1x40x1xf32> to vector<40x1xf32>
    %75 = vector.broadcast %74 : vector<40x1xf32> to vector<40x384xf32>
    %76 = arith.addf %72, %75 : vector<40x384xf32>
    %cst_41 = arith.constant 5.000000e-01 : f32
    %77 = vector.broadcast %cst_41 : f32 to vector<40x384xf32>
    %78 = arith.mulf %77, %76 : vector<40x384xf32>
    %79 = math.tanh %78 : vector<40x384xf32>
    %cst_42 = arith.constant 5.000000e-01 : f32
    %80 = vector.broadcast %cst_42 : f32 to vector<40x384xf32>
    %81 = arith.mulf %80, %79 : vector<40x384xf32>
    %cst_43 = arith.constant 5.000000e-01 : f32
    %82 = vector.broadcast %cst_43 : f32 to vector<40x384xf32>
    %83 = arith.addf %82, %81 : vector<40x384xf32>
    %84 = arith.mulf %76, %83 : vector<40x384xf32>
    %c4_44 = arith.constant 4 : index
    %c0_45 = arith.constant 0 : index
    %c0_46 = arith.constant 0 : index
    %85 = vector.load %arg3[%c4_44, %c0_45, %c0_46] : memref<8x40x40xf32, #tpu.memory_space<vmem>>, vector<1x40x40xf32>
    %86 = vector.shape_cast %85 : vector<1x40x40xf32> to vector<40x40xf32>
    %cst_47 = arith.constant dense<0.000000e+00> : vector<40x384xf32>
    %87 = tpu.matmul %86, %84, %cst_47 {dimension_numbers = #tpu.dot_dimension_numbers<[1], [0], [0], [1], [0, 0, 1, 1], [], []>} : vector<40x40xf32>, vector<40x384xf32>, vector<40x384xf32> -> vector<40x384xf32>
    %c5 = arith.constant 5 : index
    %c0_48 = arith.constant 0 : index
    %c0_49 = arith.constant 0 : index
    %88 = vector.load %arg5[%c5, %c0_48, %c0_49] : memref<10x40x1xf32, #tpu.memory_space<vmem>>, vector<1x40x1xf32>
    %89 = vector.shape_cast %88 : vector<1x40x1xf32> to vector<40x1xf32>
    %90 = vector.broadcast %89 : vector<40x1xf32> to vector<40x384xf32>
    %91 = arith.addf %87, %90 : vector<40x384xf32>
    %cst_50 = arith.constant 5.000000e-01 : f32
    %92 = vector.broadcast %cst_50 : f32 to vector<40x384xf32>
    %93 = arith.mulf %92, %91 : vector<40x384xf32>
    %94 = math.tanh %93 : vector<40x384xf32>
    %cst_51 = arith.constant 5.000000e-01 : f32
    %95 = vector.broadcast %cst_51 : f32 to vector<40x384xf32>
    %96 = arith.mulf %95, %94 : vector<40x384xf32>
    %cst_52 = arith.constant 5.000000e-01 : f32
    %97 = vector.broadcast %cst_52 : f32 to vector<40x384xf32>
    %98 = arith.addf %97, %96 : vector<40x384xf32>
    %99 = arith.mulf %91, %98 : vector<40x384xf32>
    %c5_53 = arith.constant 5 : index
    %c0_54 = arith.constant 0 : index
    %c0_55 = arith.constant 0 : index
    %100 = vector.load %arg3[%c5_53, %c0_54, %c0_55] : memref<8x40x40xf32, #tpu.memory_space<vmem>>, vector<1x40x40xf32>
    %101 = vector.shape_cast %100 : vector<1x40x40xf32> to vector<40x40xf32>
    %cst_56 = arith.constant dense<0.000000e+00> : vector<40x384xf32>
    %102 = tpu.matmul %101, %99, %cst_56 {dimension_numbers = #tpu.dot_dimension_numbers<[1], [0], [0], [1], [0, 0, 1, 1], [], []>} : vector<40x40xf32>, vector<40x384xf32>, vector<40x384xf32> -> vector<40x384xf32>
    %c6 = arith.constant 6 : index
    %c0_57 = arith.constant 0 : index
    %c0_58 = arith.constant 0 : index
    %103 = vector.load %arg5[%c6, %c0_57, %c0_58] : memref<10x40x1xf32, #tpu.memory_space<vmem>>, vector<1x40x1xf32>
    %104 = vector.shape_cast %103 : vector<1x40x1xf32> to vector<40x1xf32>
    %105 = vector.broadcast %104 : vector<40x1xf32> to vector<40x384xf32>
    %106 = arith.addf %102, %105 : vector<40x384xf32>
    %cst_59 = arith.constant 5.000000e-01 : f32
    %107 = vector.broadcast %cst_59 : f32 to vector<40x384xf32>
    %108 = arith.mulf %107, %106 : vector<40x384xf32>
    %109 = math.tanh %108 : vector<40x384xf32>
    %cst_60 = arith.constant 5.000000e-01 : f32
    %110 = vector.broadcast %cst_60 : f32 to vector<40x384xf32>
    %111 = arith.mulf %110, %109 : vector<40x384xf32>
    %cst_61 = arith.constant 5.000000e-01 : f32
    %112 = vector.broadcast %cst_61 : f32 to vector<40x384xf32>
    %113 = arith.addf %112, %111 : vector<40x384xf32>
    %114 = arith.mulf %106, %113 : vector<40x384xf32>
    %c6_62 = arith.constant 6 : index
    %c0_63 = arith.constant 0 : index
    %c0_64 = arith.constant 0 : index
    %115 = vector.load %arg3[%c6_62, %c0_63, %c0_64] : memref<8x40x40xf32, #tpu.memory_space<vmem>>, vector<1x40x40xf32>
    %116 = vector.shape_cast %115 : vector<1x40x40xf32> to vector<40x40xf32>
    %cst_65 = arith.constant dense<0.000000e+00> : vector<40x384xf32>
    %117 = tpu.matmul %116, %114, %cst_65 {dimension_numbers = #tpu.dot_dimension_numbers<[1], [0], [0], [1], [0, 0, 1, 1], [], []>} : vector<40x40xf32>, vector<40x384xf32>, vector<40x384xf32> -> vector<40x384xf32>
    %c7 = arith.constant 7 : index
    %c0_66 = arith.constant 0 : index
    %c0_67 = arith.constant 0 : index
    %118 = vector.load %arg5[%c7, %c0_66, %c0_67] : memref<10x40x1xf32, #tpu.memory_space<vmem>>, vector<1x40x1xf32>
    %119 = vector.shape_cast %118 : vector<1x40x1xf32> to vector<40x1xf32>
    %120 = vector.broadcast %119 : vector<40x1xf32> to vector<40x384xf32>
    %121 = arith.addf %117, %120 : vector<40x384xf32>
    %cst_68 = arith.constant 5.000000e-01 : f32
    %122 = vector.broadcast %cst_68 : f32 to vector<40x384xf32>
    %123 = arith.mulf %122, %121 : vector<40x384xf32>
    %124 = math.tanh %123 : vector<40x384xf32>
    %cst_69 = arith.constant 5.000000e-01 : f32
    %125 = vector.broadcast %cst_69 : f32 to vector<40x384xf32>
    %126 = arith.mulf %125, %124 : vector<40x384xf32>
    %cst_70 = arith.constant 5.000000e-01 : f32
    %127 = vector.broadcast %cst_70 : f32 to vector<40x384xf32>
    %128 = arith.addf %127, %126 : vector<40x384xf32>
    %129 = arith.mulf %121, %128 : vector<40x384xf32>
    %c7_71 = arith.constant 7 : index
    %c0_72 = arith.constant 0 : index
    %c0_73 = arith.constant 0 : index
    %130 = vector.load %arg3[%c7_71, %c0_72, %c0_73] : memref<8x40x40xf32, #tpu.memory_space<vmem>>, vector<1x40x40xf32>
    %131 = vector.shape_cast %130 : vector<1x40x40xf32> to vector<40x40xf32>
    %cst_74 = arith.constant dense<0.000000e+00> : vector<40x384xf32>
    %132 = tpu.matmul %131, %129, %cst_74 {dimension_numbers = #tpu.dot_dimension_numbers<[1], [0], [0], [1], [0, 0, 1, 1], [], []>} : vector<40x40xf32>, vector<40x384xf32>, vector<40x384xf32> -> vector<40x384xf32>
    %c8 = arith.constant 8 : index
    %c0_75 = arith.constant 0 : index
    %c0_76 = arith.constant 0 : index
    %133 = vector.load %arg5[%c8, %c0_75, %c0_76] : memref<10x40x1xf32, #tpu.memory_space<vmem>>, vector<1x40x1xf32>
    %134 = vector.shape_cast %133 : vector<1x40x1xf32> to vector<40x1xf32>
    %135 = vector.broadcast %134 : vector<40x1xf32> to vector<40x384xf32>
    %136 = arith.addf %132, %135 : vector<40x384xf32>
    %cst_77 = arith.constant 5.000000e-01 : f32
    %137 = vector.broadcast %cst_77 : f32 to vector<40x384xf32>
    %138 = arith.mulf %137, %136 : vector<40x384xf32>
    %139 = math.tanh %138 : vector<40x384xf32>
    %cst_78 = arith.constant 5.000000e-01 : f32
    %140 = vector.broadcast %cst_78 : f32 to vector<40x384xf32>
    %141 = arith.mulf %140, %139 : vector<40x384xf32>
    %cst_79 = arith.constant 5.000000e-01 : f32
    %142 = vector.broadcast %cst_79 : f32 to vector<40x384xf32>
    %143 = arith.addf %142, %141 : vector<40x384xf32>
    %144 = arith.mulf %136, %143 : vector<40x384xf32>
    %c0_80 = arith.constant 0 : index
    %c0_81 = arith.constant 0 : index
    %145 = vector.load %arg4[%c0_80, %c0_81] : memref<40x1xf32, #tpu.memory_space<vmem>>, vector<40x1xf32>
    %146 = vector.broadcast %145 : vector<40x1xf32> to vector<40x384xf32>
    %147 = arith.mulf %144, %146 : vector<40x384xf32>
    %cst_82 = arith.constant dense<0.000000e+00> : vector<384xf32>
    %148 = vector.multi_reduction <add>, %147, %cst_82 [0] : vector<40x384xf32> to vector<384xf32>
    %149 = vector.shape_cast %148 : vector<384xf32> to vector<1x384xf32>
    %c9 = arith.constant 9 : index
    %c0_83 = arith.constant 0 : index
    %c0_84 = arith.constant 0 : index
    %150 = vector.load %arg5[%c9, %c0_83, %c0_84] : memref<10x40x1xf32, #tpu.memory_space<vmem>>, vector<1x1x1xf32>
    %151 = vector.shape_cast %150 : vector<1x1x1xf32> to vector<1x1xf32>
    %152 = vector.broadcast %151 : vector<1x1xf32> to vector<1x384xf32>
    %153 = arith.addf %149, %152 : vector<1x384xf32>
    %c0_85 = arith.constant 0 : index
    %c0_86 = arith.constant 0 : index
    %154 = vector.load %arg6[%c0_85, %c0_86] : memref<1x384xf32, #tpu.memory_space<vmem>>, vector<1x384xf32>
    tpu.vector_store %arg6[%c0_85, %c0_86], %153 {strides = array<i32>} : memref<1x384xf32, #tpu.memory_space<vmem>>, vector<1x384xf32>,
    return
  }
  func.func @transform_0(%arg0: i32) -> (i32, i32) {
    %c0_i32 = arith.constant 0 : i32
    %c0_i32_0 = arith.constant 0 : i32
    return %c0_i32, %arg0 : i32, i32
  }
  func.func @transform_1(%arg0: i32) -> (i32, i32) {
    %c0_i32 = arith.constant 0 : i32
    %c0_i32_0 = arith.constant 0 : i32
    %c0_i32_1 = arith.constant 0 : i32
    return %c0_i32, %c0_i32_0 : i32, i32
  }
  func.func @transform_2(%arg0: i32) -> (i32, i32, i32) {
    %c0_i32 = arith.constant 0 : i32
    %c0_i32_0 = arith.constant 0 : i32
    %c0_i32_1 = arith.constant 0 : i32
    %c0_i32_2 = arith.constant 0 : i32
    return %c0_i32, %c0_i32_0, %c0_i32_1 : i32, i32, i32
  }
  func.func @transform_3(%arg0: i32) -> (i32, i32) {
    %c0_i32 = arith.constant 0 : i32
    %c0_i32_0 = arith.constant 0 : i32
    %c0_i32_1 = arith.constant 0 : i32
    return %c0_i32, %c0_i32_0 : i32, i32
  }
  func.func @transform_4(%arg0: i32) -> (i32, i32, i32) {
    %c0_i32 = arith.constant 0 : i32
    %c0_i32_0 = arith.constant 0 : i32
    %c0_i32_1 = arith.constant 0 : i32
    %c0_i32_2 = arith.constant 0 : i32
    return %c0_i32, %c0_i32_0, %c0_i32_1 : i32, i32, i32
  }
  func.func @transform_5(%arg0: i32) -> (i32, i32) {
    %c0_i32 = arith.constant 0 : i32
    %c0_i32_0 = arith.constant 0 : i32
    return %c0_i32, %arg0 : i32, i32
  }
}

</mosaic_0001>

<llo_original>
// kernel: pinn_t_forward.1
$region0: #{pinn_t_forward.1}
  #allocation0 [shape = 'u32[]', space=smem, size = 0x4, offset = 0x4, fixed_abs, tag = 'smem constant byte address 0x4 - core index']
  #allocation1 [shape = 'u32[144,128]{1,0:T(1,128)}', space=vmem, size = 0x12000, scoped, tag = 'internal scratch']
  %s0 = inlined_call_operand.vmem [shape: f32[2,384], index: 0, kind: input, shape index: {}]
  %s1 = inlined_call_operand.vmem [shape: f32[40,2], index: 1, kind: input, shape index: {}]
  %s2 = inlined_call_operand.vmem [shape: f32[8,40,40], index: 2, kind: input, shape index: {}]
  %s3 = inlined_call_operand.vmem [shape: f32[40,1], index: 3, kind: input, shape index: {}]
  %s4 = inlined_call_operand.vmem [shape: f32[10,40,1], index: 4, kind: input, shape index: {}]
  %s5 = inlined_call_operand.vmem [shape: f32[1,384], index: 5, kind: output, shape index: {}]
  %s6 = sld [smem:[#allocation0]]
  $region30: #{pinn_t_forward.1} parent=0
    _
  %s8 = ssub.s32 1, %s6
  %s9 = scalar_select 0, %s8, %s6
  // Predicated region
  $region2: #{pinn_t_forward.1} parent=0 // pred_check
    _
  $region3: #{pinn_t_forward.1} parent=0 // pred_check_branch
    %11 = sbr.rel (0) target = $region5
  $region4: #{pinn_t_forward.1} parent=0 // pred_region
    _
  $region5: #{pinn_t_forward.1} parent=0 // pred_fallthru
    _
  // Predicated region
  $region6: #{pinn_t_forward.1} parent=0 // pred_check
    _
  $region7: #{pinn_t_forward.1} parent=0 // pred_check_branch
    %13 = sbr.rel (0) target = $region9
  $region8: #{pinn_t_forward.1} parent=0 // pred_region
    _
  $region9: #{pinn_t_forward.1} parent=0 // pred_fallthru
    _
  // Predicated region
  $region10: #{pinn_t_forward.1} parent=0 // pred_check
    _
  $region11: #{pinn_t_forward.1} parent=0 // pred_check_branch
    %15 = sbr.rel (0) target = $region13
  $region12: #{pinn_t_forward.1} parent=0 // pred_region
    _
  $region13: #{pinn_t_forward.1} parent=0 // pred_fallthru
    _
  // Predicated region
  $region14: #{pinn_t_forward.1} parent=0 // pred_check
    _
  $region15: #{pinn_t_forward.1} parent=0 // pred_check_branch
    %17 = sbr.rel (0) target = $region17
  $region16: #{pinn_t_forward.1} parent=0 // pred_region
    _
  $region17: #{pinn_t_forward.1} parent=0 // pred_fallthru
    _
  // Predicated region
  $region18: #{pinn_t_forward.1} parent=0 // pred_check
    _
  $region19: #{pinn_t_forward.1} parent=0 // pred_check_branch
    %19 = sbr.rel (0) target = $region21
  $region20: #{pinn_t_forward.1} parent=0 // pred_region
    _
  $region21: #{pinn_t_forward.1} parent=0 // pred_fallthru
    _
  %v20 = vld [vmem:[%s0] sm:$0x3f]
  %v21 = vld [vmem:[%s1] sm:$0xff]
  %v22 = vld [vmem:[%s1 + $0x8] sm:$0xff]
  %v23 = vld [vmem:[%s1 + $0x10] sm:$0xff]
  %v24 = vld [vmem:[%s1 + $0x18] sm:$0xff]
  %v25 = vld [vmem:[%s1 + $0x20] sm:$0xff]
  %27 = vset.pattern.permute.xlu0 0
  %28 = vperm.xlu0 %27, %v21
  %v29 = vpop.permute.xlu0 %28
  %32 = vset.pattern.permute.xlu0 0
  %33 = vperm.xlu0 %32, %v22
  %v34 = vpop.permute.xlu0 %33
  %37 = vset.pattern.permute.xlu0 0
  %38 = vperm.xlu0 %37, %v23
  %v39 = vpop.permute.xlu0 %38
  %42 = vset.pattern.permute.xlu0 0
  %43 = vperm.xlu0 %42, %v24
  %v44 = vpop.permute.xlu0 %43
  %47 = vset.pattern.permute.xlu0 0
  %48 = vperm.xlu0 %47, %v25
  %v49 = vpop.permute.xlu0 %48
  %v52 = vlaneseq
  %v53 = vshrl.u32 %v52, 7
  %v54 = vsub.s32 0, %v53
  %v55 = vrot.slane %v20, %v54
  %v56 = vlaneseq
  %v57 = vshrl.u32 %v56, 7
  %v58 = vsub.s32 2, %v57
  %v59 = vrot.slane %v20, %v58
  %v60 = vlaneseq
  %v61 = vshrl.u32 %v60, 7
  %v62 = vsub.s32 4, %v61
  %v63 = vrot.slane %v20, %v62
  %v67 = vlaneseq
  %v68 = vshrl.u32 %v67, 7
  %v69 = vsub.s32 0, %v68
  %v70 = vrot.slane %v55, %v69
  %v71 = vlaneseq
  %v72 = vshrl.u32 %v71, 7
  %v73 = vsub.s32 0, %v72
  %v74 = vrot.slane %v59, %v73
  %v75 = vlaneseq
  %v76 = vshrl.u32 %v75, 7
  %v77 = vsub.s32 0, %v76
  %v78 = vrot.slane %v63, %v77
  %v79 = vmul.f32 %v29, %v70
  %v80 = vmul.f32 %v29, %v74
  %v81 = vmul.f32 %v29, %v78
  %v82 = vmul.f32 %v34, %v70
  %v83 = vmul.f32 %v34, %v74
  %v84 = vmul.f32 %v34, %v78
  %v85 = vmul.f32 %v39, %v70
  %v86 = vmul.f32 %v39, %v74
  %v87 = vmul.f32 %v39, %v78
  %v88 = vmul.f32 %v44, %v70
  %v89 = vmul.f32 %v44, %v74
  %v90 = vmul.f32 %v44, %v78
  %v91 = vmul.f32 %v49, %v70
  %v92 = vmul.f32 %v49, %v74
  %v93 = vmul.f32 %v49, %v78
  %94 = vset.pattern.permute.xlu0 1
  %95 = vperm.xlu0 %94, %v21
  %v96 = vpop.permute.xlu0 %95
  %98 = vset.pattern.permute.xlu0 1
  %99 = vperm.xlu0 %98, %v22
  %v100 = vpop.permute.xlu0 %99
  %102 = vset.pattern.permute.xlu0 1
  %103 = vperm.xlu0 %102, %v23
  %v104 = vpop.permute.xlu0 %103
  %106 = vset.pattern.permute.xlu0 1
  %107 = vperm.xlu0 %106, %v24
  %v108 = vpop.permute.xlu0 %107
  %110 = vset.pattern.permute.xlu0 1
  %111 = vperm.xlu0 %110, %v25
  %v112 = vpop.permute.xlu0 %111
  %v114 = vlaneseq
  %v115 = vshrl.u32 %v114, 7
  %v116 = vsub.s32 1, %v115
  %v117 = vrot.slane %v20, %v116
  %v118 = vlaneseq
  %v119 = vshrl.u32 %v118, 7
  %v120 = vsub.s32 3, %v119
  %v121 = vrot.slane %v20, %v120
  %v122 = vlaneseq
  %v123 = vshrl.u32 %v122, 7
  %v124 = vsub.s32 5, %v123
  %v125 = vrot.slane %v20, %v124
  %v129 = vlaneseq
  %v130 = vshrl.u32 %v129, 7
  %v131 = vsub.s32 1, %v130
  %v132 = vrot.slane %v117, %v131
  %v133 = vlaneseq
  %v134 = vshrl.u32 %v133, 7
  %v135 = vsub.s32 1, %v134
  %v136 = vrot.slane %v121, %v135
  %v137 = vlaneseq
  %v138 = vshrl.u32 %v137, 7
  %v139 = vsub.s32 1, %v138
  %v140 = vrot.slane %v125, %v139
  %v141 = vmul.f32 %v96, %v132
  %v142 = vmul.f32 %v96, %v136
  %v143 = vmul.f32 %v96, %v140
  %v144 = vmul.f32 %v100, %v132
  %v145 = vmul.f32 %v100, %v136
  %v146 = vmul.f32 %v100, %v140
  %v147 = vmul.f32 %v104, %v132
  %v148 = vmul.f32 %v104, %v136
  %v149 = vmul.f32 %v104, %v140
  %v150 = vmul.f32 %v108, %v132
  %v151 = vmul.f32 %v108, %v136
  %v152 = vmul.f32 %v108, %v140
  %v153 = vmul.f32 %v112, %v132
  %v154 = vmul.f32 %v112, %v136
  %v155 = vmul.f32 %v112, %v140
  %v156 = vadd.f32 %v79, %v141
  %v157 = vadd.f32 %v80, %v142
  %v158 = vadd.f32 %v81, %v143
  %v159 = vadd.f32 %v82, %v144
  %v160 = vadd.f32 %v83, %v145
  %v161 = vadd.f32 %v84, %v146
  %v162 = vadd.f32 %v85, %v147
  %v163 = vadd.f32 %v86, %v148
  %v164 = vadd.f32 %v87, %v149
  %v165 = vadd.f32 %v88, %v150
  %v166 = vadd.f32 %v89, %v151
  %v167 = vadd.f32 %v90, %v152
  %v168 = vadd.f32 %v91, %v153
  %v169 = vadd.f32 %v92, %v154
  %v170 = vadd.f32 %v93, %v155
  %v171 = vld [vmem:[%s4] sm:$0xff]
  %v172 = vld [vmem:[%s4 + $0x8] sm:$0xff]
  %v173 = vld [vmem:[%s4 + $0x10] sm:$0xff]
  %v174 = vld [vmem:[%s4 + $0x18] sm:$0xff]
  %v175 = vld [vmem:[%s4 + $0x20] sm:$0xff]
  %177 = vset.pattern.permute.xlu0 0
  %178 = vperm.xlu0 %177, %v171
  %v179 = vpop.permute.xlu0 %178
  %182 = vset.pattern.permute.xlu0 0
  %183 = vperm.xlu0 %182, %v172
  %v184 = vpop.permute.xlu0 %183
  %187 = vset.pattern.permute.xlu0 0
  %188 = vperm.xlu0 %187, %v173
  %v189 = vpop.permute.xlu0 %188
  %192 = vset.pattern.permute.xlu0 0
  %193 = vperm.xlu0 %192, %v174
  %v194 = vpop.permute.xlu0 %193
  %197 = vset.pattern.permute.xlu0 0
  %198 = vperm.xlu0 %197, %v175
  %v199 = vpop.permute.xlu0 %198
  %v201 = vadd.f32 %v156, %v179
  %v202 = vadd.f32 %v157, %v179
  %v203 = vadd.f32 %v158, %v179
  %v204 = vadd.f32 %v159, %v184
  %v205 = vadd.f32 %v160, %v184
  %v206 = vadd.f32 %v161, %v184
  %v207 = vadd.f32 %v162, %v189
  %v208 = vadd.f32 %v163, %v189
  %v209 = vadd.f32 %v164, %v189
  %v210 = vadd.f32 %v165, %v194
  %v211 = vadd.f32 %v166, %v194
  %v212 = vadd.f32 %v167, %v194
  %v213 = vadd.f32 %v168, %v199
  %v214 = vadd.f32 %v169, %v199
  %v215 = vadd.f32 %v170, %v199
  %v216 = vmul.f32 %v201, 0.5
  %v217 = vmul.f32 %v202, 0.5
  %v218 = vmul.f32 %v203, 0.5
  %v219 = vmul.f32 %v204, 0.5
  %v220 = vmul.f32 %v205, 0.5
  %v221 = vmul.f32 %v206, 0.5
  %v222 = vmul.f32 %v207, 0.5
  %v223 = vmul.f32 %v208, 0.5
  %v224 = vmul.f32 %v209, 0.5
  %v225 = vmul.f32 %v210, 0.5
  %v226 = vmul.f32 %v211, 0.5
  %v227 = vmul.f32 %v212, 0.5
  %v228 = vmul.f32 %v213, 0.5
  %v229 = vmul.f32 %v214, 0.5
  %v230 = vmul.f32 %v215, 0.5
  %v231 = vtanh.pop %v216
  %v232 = vtanh.pop %v217
  %v233 = vtanh.pop %v218
  %v234 = vtanh.pop %v219
  %v235 = vtanh.pop %v220
  %v236 = vtanh.pop %v221
  %v237 = vtanh.pop %v222
  %v238 = vtanh.pop %v223
  %v239 = vtanh.pop %v224
  %v240 = vtanh.pop %v225
  %v241 = vtanh.pop %v226
  %v242 = vtanh.pop %v227
  %v243 = vtanh.pop %v228
  %v244 = vtanh.pop %v229
  %v245 = vtanh.pop %v230
  %v246 = vmul.f32 %v231, 0.5
  %v247 = vmul.f32 %v232, 0.5
  %v248 = vmul.f32 %v233, 0.5
  %v249 = vmul.f32 %v234, 0.5
  %v250 = vmul.f32 %v235, 0.5
  %v251 = vmul.f32 %v236, 0.5
  %v252 = vmul.f32 %v237, 0.5
  %v253 = vmul.f32 %v238, 0.5
  %v254 = vmul.f32 %v239, 0.5
  %v255 = vmul.f32 %v240, 0.5
  %v256 = vmul.f32 %v241, 0.5
  %v257 = vmul.f32 %v242, 0.5
  %v258 = vmul.f32 %v243, 0.5
  %v259 = vmul.f32 %v244, 0.5
  %v260 = vmul.f32 %v245, 0.5
  %v261 = vadd.f32 %v246, 0.5
  %v262 = vadd.f32 %v247, 0.5
  %v263 = vadd.f32 %v248, 0.5
  %v264 = vadd.f32 %v249, 0.5
  %v265 = vadd.f32 %v250, 0.5
  %v266 = vadd.f32 %v251, 0.5
  %v267 = vadd.f32 %v252, 0.5
  %v268 = vadd.f32 %v253, 0.5
  %v269 = vadd.f32 %v254, 0.5
  %v270 = vadd.f32 %v255, 0.5
  %v271 = vadd.f32 %v256, 0.5
  %v272 = vadd.f32 %v257, 0.5
  %v273 = vadd.f32 %v258, 0.5
  %v274 = vadd.f32 %v259, 0.5
  %v275 = vadd.f32 %v260, 0.5
  %v276 = vmul.f32 %v201, %v261
  %v277 = vmul.f32 %v202, %v262
  %v278 = vmul.f32 %v203, %v263
  %v279 = vmul.f32 %v204, %v264
  %v280 = vmul.f32 %v205, %v265
  %v281 = vmul.f32 %v206, %v266
  %v282 = vmul.f32 %v207, %v267
  %v283 = vmul.f32 %v208, %v268
  %v284 = vmul.f32 %v209, %v269
  %v285 = vmul.f32 %v210, %v270
  %v286 = vmul.f32 %v211, %v271
  %v287 = vmul.f32 %v212, %v272
  %v288 = vmul.f32 %v213, %v273
  %v289 = vmul.f32 %v214, %v274
  %v290 = vmul.f32 %v215, %v275
  %v291 = vld [vmem:[%s2] sm:$0xff]
  %v292 = vld [vmem:[%s2 + $0x8] sm:$0xff]
  %v293 = vld [vmem:[%s2 + $0x10] sm:$0xff]
  %v294 = vld [vmem:[%s2 + $0x18] sm:$0xff]
  %v295 = vld [vmem:[%s2 + $0x20] sm:$0xff]
  %s296 = scalar_lea.vmem %s4, 40
  %v297 = vld [vmem:[%s296] sm:$0xff]
  %v298 = vld [vmem:[%s296 + $0x8] sm:$0xff]
  %v299 = vld [vmem:[%s296 + $0x10] sm:$0xff]
  %v300 = vld [vmem:[%s296 + $0x18] sm:$0xff]
  %v301 = vld [vmem:[%s296 + $0x20] sm:$0xff]
  %303 = vset.pattern.permute.xlu0 0
  %304 = vperm.xlu0 %303, %v297
  %v305 = vpop.permute.xlu0 %304
  %308 = vset.pattern.permute.xlu0 0
  %309 = vperm.xlu0 %308, %v298
  %v310 = vpop.permute.xlu0 %309
  %313 = vset.pattern.permute.xlu0 0
  %314 = vperm.xlu0 %313, %v299
  %v315 = vpop.permute.xlu0 %314
  %318 = vset.pattern.permute.xlu0 0
  %319 = vperm.xlu0 %318, %v300
  %v320 = vpop.permute.xlu0 %319
  %323 = vset.pattern.permute.xlu0 0
  %324 = vperm.xlu0 %323, %v301
  %v325 = vpop.permute.xlu0 %324
  %vm327 = vcmask 326656
  %v329 = vsel %vm327, %v291, 0
  %v332 = vsel %vm327, %v292, 0
  %v335 = vsel %vm327, %v293, 0
  %v338 = vsel %vm327, %v294, 0
  %v341 = vsel %vm327, %v295, 0
  %343 = vmatprep.subr.mxu0 0.0
  %344 = vmatpush1.msra.mxu0 0.0
  %345 = vmatprep.subr.mxu0 0.0
  %346 = vmatpush1.msra.mxu0 0.0
  %347 = vmatprep.subr.mxu0 0.0
  %348 = vmatpush1.msra.mxu0 0.0
  %349 = vmatprep.subr.mxu0 0.0
  %350 = vmatpush1.msra.mxu0 0.0
  %351 = vmatprep.subr.mxu0 0.0
  %352 = vmatpush1.msra.mxu0 0.0
  %353 = vmatprep.subr.mxu0 0.0
  %354 = vmatpush1.msra.mxu0 0.0
  %355 = vmatprep.subr.mxu0 0.0
  %356 = vmatpush1.msra.mxu0 0.0
  %357 = vmatprep.subr.mxu0 0.0
  %358 = vmatpush1.msra.mxu0 0.0
  %359 = vmatprep.subr.mxu0 0.0
  %360 = vmatpush1.msra.mxu0 0.0
  %361 = vmatprep.subr.mxu0 0.0
  %362 = vmatpush1.msra.mxu0 0.0
  %363 = vmatprep.subr.mxu0 0.0
  %364 = vmatpush1.msra.mxu0 0.0
  %365 = vmatprep.subr.mxu0 %v289
  %366 = vmatpush1.msra.mxu0 %v288
  %367 = vmatprep.subr.mxu0 %v286
  %368 = vmatpush1.msra.mxu0 %v285
  %369 = vmatprep.subr.mxu0 %v283
  %370 = vmatpush1.msra.mxu0 %v282
  %371 = vmatprep.subr.mxu0 %v280
  %372 = vmatpush1.msra.mxu0 %v279
  %373 = vmatprep.subr.mxu0 %v277
  %374 = vmatpush1.msra.mxu0 %v276
  %375 = vmatprep.subr.mxu0 0.0
  %376 = vmatpush2.msra.mxu0 0.0
  %377 = vmatprep.subr.mxu0 0.0
  %378 = vmatpush2.msra.mxu0 0.0
  %379 = vmatprep.subr.mxu0 0.0
  %380 = vmatpush2.msra.mxu0 0.0
  %381 = vmatprep.subr.mxu0 0.0
  %382 = vmatpush2.msra.mxu0 0.0
  %383 = vmatprep.subr.mxu0 0.0
  %384 = vmatpush2.msra.mxu0 0.0
  %385 = vmatprep.subr.mxu0 0.0
  %386 = vmatpush2.msra.mxu0 0.0
  %387 = vmatprep.subr.mxu0 0.0
  %388 = vmatpush2.msra.mxu0 0.0
  %389 = vmatprep.subr.mxu0 0.0
  %390 = vmatpush2.msra.mxu0 0.0
  %391 = vmatprep.subr.mxu0 0.0
  %392 = vmatpush2.msra.mxu0 0.0
  %393 = vmatprep.subr.mxu0 0.0
  %394 = vmatpush2.msra.mxu0 0.0
  %395 = vmatprep.subr.mxu0 0.0
  %396 = vmatpush2.msra.mxu0 0.0
  %397 = vmatprep.subr.mxu0 0.0
  %398 = vmatpush2.msra.mxu0 0.0
  %399 = vmatprep.subr.mxu0 0.0
  %400 = vmatpush2.msra.mxu0 0.0
  %401 = vmatprep.subr.mxu0 0.0
  %402 = vmatpush2.msra.mxu0 0.0
  %403 = vmatprep.subr.mxu0 0.0
  %404 = vmatpush2.msra.mxu0 0.0
  %405 = vmatprep.subr.mxu0 0.0
  %406 = vmatpush2.msra.mxu0 0.0
  %407 = vmatprep.mubr.f32.mxu0 0.0
  %408 = vmatmul.mubr.f32.gmra.mxu0 %v329
  %v409 = vpop.f32.mrf.mxu0
  %v410 = vadd.f32 %v305, %v409
  %v411 = vpop.f32.mrf.mxu0
  %v412 = vadd.f32 %v305, %v411
  %413 = vmatprep.mubr.f32.mxu0 0.0
  %414 = vmatmul.mubr.f32.gmra.mxu0 %v332
  %v415 = vpop.f32.mrf.mxu0
  %v416 = vadd.f32 %v310, %v415
  %v417 = vpop.f32.mrf.mxu0
  %v418 = vadd.f32 %v310, %v417
  %419 = vmatprep.mubr.f32.mxu0 0.0
  %420 = vmatmul.mubr.f32.gmra.mxu0 %v335
  %v421 = vpop.f32.mrf.mxu0
  %v422 = vadd.f32 %v315, %v421
  %v423 = vpop.f32.mrf.mxu0
  %v424 = vadd.f32 %v315, %v423
  %425 = vmatprep.mubr.f32.mxu0 0.0
  %426 = vmatmul.mubr.f32.gmra.mxu0 %v338
  %v427 = vpop.f32.mrf.mxu0
  %v428 = vadd.f32 %v320, %v427
  %v429 = vpop.f32.mrf.mxu0
  %v430 = vadd.f32 %v320, %v429
  %431 = vmatprep.mubr.f32.mxu0 0.0
  %432 = vmatmul.mubr.f32.gmra.mxu0 %v341
  %v433 = vpop.f32.mrf.mxu0
  %v434 = vadd.f32 %v325, %v433
  %v435 = vpop.f32.mrf.mxu0
  %v436 = vadd.f32 %v325, %v435
  %437 = vdwg.mxu0
  %438 = vmatprep.subr.mxu0 0.0
  %439 = vmatpush1.msra.mxu0 0.0
  %440 = vmatprep.subr.mxu0 0.0
  %441 = vmatpush1.msra.mxu0 0.0
  %442 = vmatprep.subr.mxu0 0.0
  %443 = vmatpush1.msra.mxu0 0.0
  %444 = vmatprep.subr.mxu0 0.0
  %445 = vmatpush1.msra.mxu0 0.0
  %446 = vmatprep.subr.mxu0 0.0
  %447 = vmatpush1.msra.mxu0 0.0
  %448 = vmatprep.subr.mxu0 0.0
  %449 = vmatpush1.msra.mxu0 0.0
  %450 = vmatprep.subr.mxu0 0.0
  %451 = vmatpush1.msra.mxu0 0.0
  %452 = vmatprep.subr.mxu0 0.0
  %453 = vmatpush1.msra.mxu0 0.0
  %454 = vmatprep.subr.mxu0 0.0
  %455 = vmatpush1.msra.mxu0 0.0
  %456 = vmatprep.subr.mxu0 0.0
  %457 = vmatpush1.msra.mxu0 0.0
  %458 = vmatprep.subr.mxu0 0.0
  %459 = vmatpush1.msra.mxu0 0.0
  %460 = vmatprep.subr.mxu0 0.0
  %461 = vmatpush1.msra.mxu0 %v290
  %462 = vmatprep.subr.mxu0 0.0
  %463 = vmatpush1.msra.mxu0 %v287
  %464 = vmatprep.subr.mxu0 0.0
  %465 = vmatpush1.msra.mxu0 %v284
  %466 = vmatprep.subr.mxu0 0.0
  %467 = vmatpush1.msra.mxu0 %v281
  %468 = vmatprep.subr.mxu0 0.0
  %469 = vmatpush1.msra.mxu0 %v278
  %470 = vmatprep.subr.mxu0 0.0
  %471 = vmatpush2.msra.mxu0 0.0
  %472 = vmatprep.subr.mxu0 0.0
  %473 = vmatpush2.msra.mxu0 0.0
  %474 = vmatprep.subr.mxu0 0.0
  %475 = vmatpush2.msra.mxu0 0.0
  %476 = vmatprep.subr.mxu0 0.0
  %477 = vmatpush2.msra.mxu0 0.0
  %478 = vmatprep.subr.mxu0 0.0
  %479 = vmatpush2.msra.mxu0 0.0
  %480 = vmatprep.subr.mxu0 0.0
  %481 = vmatpush2.msra.mxu0 0.0
  %482 = vmatprep.subr.mxu0 0.0
  %483 = vmatpush2.msra.mxu0 0.0
  %484 = vmatprep.subr.mxu0 0.0
  %485 = vmatpush2.msra.mxu0 0.0
  %486 = vmatprep.subr.mxu0 0.0
  %487 = vmatpush2.msra.mxu0 0.0
  %488 = vmatprep.subr.mxu0 0.0
  %489 = vmatpush2.msra.mxu0 0.0
  %490 = vmatprep.subr.mxu0 0.0
  %491 = vmatpush2.msra.mxu0 0.0
  %492 = vmatprep.subr.mxu0 0.0
  %493 = vmatpush2.msra.mxu0 0.0
  %494 = vmatprep.subr.mxu0 0.0
  %495 = vmatpush2.msra.mxu0 0.0
  %496 = vmatprep.subr.mxu0 0.0
  %497 = vmatpush2.msra.mxu0 0.0
  %498 = vmatprep.subr.mxu0 0.0
  %499 = vmatpush2.msra.mxu0 0.0
  %500 = vmatprep.subr.mxu0 0.0
  %501 = vmatpush2.msra.mxu0 0.0
  %502 = vmatprep.mubr.f32.mxu0 0.0
  %503 = vmatmul.mubr.f32.gmra.mxu0 %v329
  %v504 = vpop.f32.mrf.mxu0
  %v505 = vadd.f32 %v305, %v504
  %v506 = vpop.f32.mrf.mxu0
  %507 = vmatprep.mubr.f32.mxu0 0.0
  %508 = vmatmul.mubr.f32.gmra.mxu0 %v332
  %v509 = vpop.f32.mrf.mxu0
  %v510 = vadd.f32 %v310, %v509
  %v511 = vpop.f32.mrf.mxu0
  %512 = vmatprep.mubr.f32.mxu0 0.0
  %513 = vmatmul.mubr.f32.gmra.mxu0 %v335
  %v514 = vpop.f32.mrf.mxu0
  %v515 = vadd.f32 %v315, %v514
  %v516 = vpop.f32.mrf.mxu0
  %517 = vmatprep.mubr.f32.mxu0 0.0
  %518 = vmatmul.mubr.f32.gmra.mxu0 %v338
  %v519 = vpop.f32.mrf.mxu0
  %v520 = vadd.f32 %v320, %v519
  %v521 = vpop.f32.mrf.mxu0
  %522 = vmatprep.mubr.f32.mxu0 0.0
  %523 = vmatmul.mubr.f32.gmra.mxu0 %v341
  %v524 = vpop.f32.mrf.mxu0
  %v525 = vadd.f32 %v325, %v524
  %v526 = vpop.f32.mrf.mxu0
  %527 = vdwg.mxu0
  %v528 = vmul.f32 %v410, 0.5
  %v529 = vmul.f32 %v412, 0.5
  %v530 = vmul.f32 %v505, 0.5
  %v531 = vmul.f32 %v416, 0.5
  %v532 = vmul.f32 %v418, 0.5
  %v533 = vmul.f32 %v510, 0.5
  %v534 = vmul.f32 %v422, 0.5
  %v535 = vmul.f32 %v424, 0.5
  %v536 = vmul.f32 %v515, 0.5
  %v537 = vmul.f32 %v428, 0.5
  %v538 = vmul.f32 %v430, 0.5
  %v539 = vmul.f32 %v520, 0.5
  %v540 = vmul.f32 %v434, 0.5
  %v541 = vmul.f32 %v436, 0.5
  %v542 = vmul.f32 %v525, 0.5
  %v543 = vtanh.pop %v528
  %v544 = vtanh.pop %v529
  %v545 = vtanh.pop %v530
  %v546 = vtanh.pop %v531
  %v547 = vtanh.pop %v532
  %v548 = vtanh.pop %v533
  %v549 = vtanh.pop %v534
  %v550 = vtanh.pop %v535
  %v551 = vtanh.pop %v536
  %v552 = vtanh.pop %v537
  %v553 = vtanh.pop %v538
  %v554 = vtanh.pop %v539
  %v555 = vtanh.pop %v540
  %v556 = vtanh.pop %v541
  %v557 = vtanh.pop %v542
  %v558 = vmul.f32 %v543, 0.5
  %v559 = vmul.f32 %v544, 0.5
  %v560 = vmul.f32 %v545, 0.5
  %v561 = vmul.f32 %v546, 0.5
  %v562 = vmul.f32 %v547, 0.5
  %v563 = vmul.f32 %v548, 0.5
  %v564 = vmul.f32 %v549, 0.5
  %v565 = vmul.f32 %v550, 0.5
  %v566 = vmul.f32 %v551, 0.5
  %v567 = vmul.f32 %v552, 0.5
  %v568 = vmul.f32 %v553, 0.5
  %v569 = vmul.f32 %v554, 0.5
  %v570 = vmul.f32 %v555, 0.5
  %v571 = vmul.f32 %v556, 0.5
  %v572 = vmul.f32 %v557, 0.5
  %v573 = vadd.f32 %v558, 0.5
  %v574 = vadd.f32 %v559, 0.5
  %v575 = vadd.f32 %v560, 0.5
  %v576 = vadd.f32 %v561, 0.5
  %v577 = vadd.f32 %v562, 0.5
  %v578 = vadd.f32 %v563, 0.5
  %v579 = vadd.f32 %v564, 0.5
  %v580 = vadd.f32 %v565, 0.5
  %v581 = vadd.f32 %v566, 0.5
  %v582 = vadd.f32 %v567, 0.5
  %v583 = vadd.f32 %v568, 0.5
  %v584 = vadd.f32 %v569, 0.5
  %v585 = vadd.f32 %v570, 0.5
  %v586 = vadd.f32 %v571, 0.5
  %v587 = vadd.f32 %v572, 0.5
  %v588 = vmul.f32 %v410, %v573
  %v589 = vmul.f32 %v412, %v574
  %v590 = vmul.f32 %v505, %v575
  %v591 = vmul.f32 %v416, %v576
  %v592 = vmul.f32 %v418, %v577
  %v593 = vmul.f32 %v510, %v578
  %v594 = vmul.f32 %v422, %v579
  %v595 = vmul.f32 %v424, %v580
  %v596 = vmul.f32 %v515, %v581
  %v597 = vmul.f32 %v428, %v582
  %v598 = vmul.f32 %v430, %v583
  %v599 = vmul.f32 %v520, %v584
  %v600 = vmul.f32 %v434, %v585
  %v601 = vmul.f32 %v436, %v586
  %v602 = vmul.f32 %v525, %v587
  %s603 = scalar_lea.vmem %s2, 40
  %v604 = vld [vmem:[%s603] sm:$0xff]
  %v605 = vld [vmem:[%s603 + $0x8] sm:$0xff]
  %v606 = vld [vmem:[%s603 + $0x10] sm:$0xff]
  %v607 = vld [vmem:[%s603 + $0x18] sm:$0xff]
  %v608 = vld [vmem:[%s603 + $0x20] sm:$0xff]
  %s609 = scalar_lea.vmem %s4, 80
  %v610 = vld [vmem:[%s609] sm:$0xff]
  %v611 = vld [vmem:[%s609 + $0x8] sm:$0xff]
  %v612 = vld [vmem:[%s609 + $0x10] sm:$0xff]
  %v613 = vld [vmem:[%s609 + $0x18] sm:$0xff]
  %v614 = vld [vmem:[%s609 + $0x20] sm:$0xff]
  %616 = vset.pattern.permute.xlu0 0
  %617 = vperm.xlu0 %616, %v610
  %v618 = vpop.permute.xlu0 %617
  %621 = vset.pattern.permute.xlu0 0
  %622 = vperm.xlu0 %621, %v611
  %v623 = vpop.permute.xlu0 %622
  %626 = vset.pattern.permute.xlu0 0
  %627 = vperm.xlu0 %626, %v612
  %v628 = vpop.permute.xlu0 %627
  %631 = vset.pattern.permute.xlu0 0
  %632 = vperm.xlu0 %631, %v613
  %v633 = vpop.permute.xlu0 %632
  %636 = vset.pattern.permute.xlu0 0
  %637 = vperm.xlu0 %636, %v614
  %v638 = vpop.permute.xlu0 %637
  %v641 = vsel %vm327, %v604, 0
  %v644 = vsel %vm327, %v605, 0
  %v647 = vsel %vm327, %v606, 0
  %v650 = vsel %vm327, %v607, 0
  %v653 = vsel %vm327, %v608, 0
  %655 = vmatprep.subr.mxu0 0.0
  %656 = vmatpush1.msra.mxu0 0.0
  %657 = vmatprep.subr.mxu0 0.0
  %658 = vmatpush1.msra.mxu0 0.0
  %659 = vmatprep.subr.mxu0 0.0
  %660 = vmatpush1.msra.mxu0 0.0
  %661 = vmatprep.subr.mxu0 0.0
  %662 = vmatpush1.msra.mxu0 0.0
  %663 = vmatprep.subr.mxu0 0.0
  %664 = vmatpush1.msra.mxu0 0.0
  %665 = vmatprep.subr.mxu0 0.0
  %666 = vmatpush1.msra.mxu0 0.0
  %667 = vmatprep.subr.mxu0 0.0
  %668 = vmatpush1.msra.mxu0 0.0
  %669 = vmatprep.subr.mxu0 0.0
  %670 = vmatpush1.msra.mxu0 0.0
  %671 = vmatprep.subr.mxu0 0.0
  %672 = vmatpush1.msra.mxu0 0.0
  %673 = vmatprep.subr.mxu0 0.0
  %674 = vmatpush1.msra.mxu0 0.0
  %675 = vmatprep.subr.mxu0 0.0
  %676 = vmatpush1.msra.mxu0 0.0
  %677 = vmatprep.subr.mxu0 %v601
  %678 = vmatpush1.msra.mxu0 %v600
  %679 = vmatprep.subr.mxu0 %v598
  %680 = vmatpush1.msra.mxu0 %v597
  %681 = vmatprep.subr.mxu0 %v595
  %682 = vmatpush1.msra.mxu0 %v594
  %683 = vmatprep.subr.mxu0 %v592
  %684 = vmatpush1.msra.mxu0 %v591
  %685 = vmatprep.subr.mxu0 %v589
  %686 = vmatpush1.msra.mxu0 %v588
  %687 = vmatprep.subr.mxu0 0.0
  %688 = vmatpush2.msra.mxu0 0.0
  %689 = vmatprep.subr.mxu0 0.0
  %690 = vmatpush2.msra.mxu0 0.0
  %691 = vmatprep.subr.mxu0 0.0
  %692 = vmatpush2.msra.mxu0 0.0
  %693 = vmatprep.subr.mxu0 0.0
  %694 = vmatpush2.msra.mxu0 0.0
  %695 = vmatprep.subr.mxu0 0.0
  %696 = vmatpush2.msra.mxu0 0.0
  %697 = vmatprep.subr.mxu0 0.0
  %698 = vmatpush2.msra.mxu0 0.0
  %699 = vmatprep.subr.mxu0 0.0
  %700 = vmatpush2.msra.mxu0 0.0
  %701 = vmatprep.subr.mxu0 0.0
  %702 = vmatpush2.msra.mxu0 0.0
  %703 = vmatprep.subr.mxu0 0.0
  %704 = vmatpush2.msra.mxu0 0.0
  %705 = vmatprep.subr.mxu0 0.0
  %706 = vmatpush2.msra.mxu0 0.0
  %707 = vmatprep.subr.mxu0 0.0
  %708 = vmatpush2.msra.mxu0 0.0
  %709 = vmatprep.subr.mxu0 0.0
  %710 = vmatpush2.msra.mxu0 0.0
  %711 = vmatprep.subr.mxu0 0.0
  %712 = vmatpush2.msra.mxu0 0.0
  %713 = vmatprep.subr.mxu0 0.0
  %714 = vmatpush2.msra.mxu0 0.0
  %715 = vmatprep.subr.mxu0 0.0
  %716 = vmatpush2.msra.mxu0 0.0
  %717 = vmatprep.subr.mxu0 0.0
  %718 = vmatpush2.msra.mxu0 0.0
  %719 = vmatprep.mubr.f32.mxu0 0.0
  %720 = vmatmul.mubr.f32.gmra.mxu0 %v641
  %v721 = vpop.f32.mrf.mxu0
  %v722 = vadd.f32 %v618, %v721
  %v723 = vpop.f32.mrf.mxu0
  %v724 = vadd.f32 %v618, %v723
  %725 = vmatprep.mubr.f32.mxu0 0.0
  %726 = vmatmul.mubr.f32.gmra.mxu0 %v644
  %v727 = vpop.f32.mrf.mxu0
  %v728 = vadd.f32 %v623, %v727
  %v729 = vpop.f32.mrf.mxu0
  %v730 = vadd.f32 %v623, %v729
  %731 = vmatprep.mubr.f32.mxu0 0.0
  %732 = vmatmul.mubr.f32.gmra.mxu0 %v647
  %v733 = vpop.f32.mrf.mxu0
  %v734 = vadd.f32 %v628, %v733
  %v735 = vpop.f32.mrf.mxu0
  %v736 = vadd.f32 %v628, %v735
  %737 = vmatprep.mubr.f32.mxu0 0.0
  %738 = vmatmul.mubr.f32.gmra.mxu0 %v650
  %v739 = vpop.f32.mrf.mxu0
  %v740 = vadd.f32 %v633, %v739
  %v741 = vpop.f32.mrf.mxu0
  %v742 = vadd.f32 %v633, %v741
  %743 = vmatprep.mubr.f32.mxu0 0.0
  %744 = vmatmul.mubr.f32.gmra.mxu0 %v653
  %v745 = vpop.f32.mrf.mxu0
  %v746 = vadd.f32 %v638, %v745
  %v747 = vpop.f32.mrf.mxu0
  %v748 = vadd.f32 %v638, %v747
  %749 = vdwg.mxu0
  %750 = vmatprep.subr.mxu0 0.0
  %751 = vmatpush1.msra.mxu0 0.0
  %752 = vmatprep.subr.mxu0 0.0
  %753 = vmatpush1.msra.mxu0 0.0
  %754 = vmatprep.subr.mxu0 0.0
  %755 = vmatpush1.msra.mxu0 0.0
  %756 = vmatprep.subr.mxu0 0.0
  %757 = vmatpush1.msra.mxu0 0.0
  %758 = vmatprep.subr.mxu0 0.0
  %759 = vmatpush1.msra.mxu0 0.0
  %760 = vmatprep.subr.mxu0 0.0
  %761 = vmatpush1.msra.mxu0 0.0
  %762 = vmatprep.subr.mxu0 0.0
  %763 = vmatpush1.msra.mxu0 0.0
  %764 = vmatprep.subr.mxu0 0.0
  %765 = vmatpush1.msra.mxu0 0.0
  %766 = vmatprep.subr.mxu0 0.0
  %767 = vmatpush1.msra.mxu0 0.0
  %768 = vmatprep.subr.mxu0 0.0
  %769 = vmatpush1.msra.mxu0 0.0
  %770 = vmatprep.subr.mxu0 0.0
  %771 = vmatpush1.msra.mxu0 0.0
  %772 = vmatprep.subr.mxu0 0.0
  %773 = vmatpush1.msra.mxu0 %v602
  %774 = vmatprep.subr.mxu0 0.0
  %775 = vmatpush1.msra.mxu0 %v599
  %776 = vmatprep.subr.mxu0 0.0
  %777 = vmatpush1.msra.mxu0 %v596
  %778 = vmatprep.subr.mxu0 0.0
  %779 = vmatpush1.msra.mxu0 %v593
  %780 = vmatprep.subr.mxu0 0.0
  %781 = vmatpush1.msra.mxu0 %v590
  %782 = vmatprep.subr.mxu0 0.0
  %783 = vmatpush2.msra.mxu0 0.0
  %784 = vmatprep.subr.mxu0 0.0
  %785 = vmatpush2.msra.mxu0 0.0
  %786 = vmatprep.subr.mxu0 0.0
  %787 = vmatpush2.msra.mxu0 0.0
  %788 = vmatprep.subr.mxu0 0.0
  %789 = vmatpush2.msra.mxu0 0.0
  %790 = vmatprep.subr.mxu0 0.0
  %791 = vmatpush2.msra.mxu0 0.0
  %792 = vmatprep.subr.mxu0 0.0
  %793 = vmatpush2.msra.mxu0 0.0
  %794 = vmatprep.subr.mxu0 0.0
  %795 = vmatpush2.msra.mxu0 0.0
  %796 = vmatprep.subr.mxu0 0.0
  %797 = vmatpush2.msra.mxu0 0.0
  %798 = vmatprep.subr.mxu0 0.0
  %799 = vmatpush2.msra.mxu0 0.0
  %800 = vmatprep.subr.mxu0 0.0
  %801 = vmatpush2.msra.mxu0 0.0
  %802 = vmatprep.subr.mxu0 0.0
  %803 = vmatpush2.msra.mxu0 0.0
  %804 = vmatprep.subr.mxu0 0.0
  %805 = vmatpush2.msra.mxu0 0.0
  %806 = vmatprep.subr.mxu0 0.0
  %807 = vmatpush2.msra.mxu0 0.0
  %808 = vmatprep.subr.mxu0 0.0
  %809 = vmatpush2.msra.mxu0 0.0
  %810 = vmatprep.subr.mxu0 0.0
  %811 = vmatpush2.msra.mxu0 0.0
  %812 = vmatprep.subr.mxu0 0.0
  %813 = vmatpush2.msra.mxu0 0.0
  %814 = vmatprep.mubr.f32.mxu0 0.0
  %815 = vmatmul.mubr.f32.gmra.mxu0 %v641
  %v816 = vpop.f32.mrf.mxu0
  %v817 = vadd.f32 %v618, %v816
  %v818 = vpop.f32.mrf.mxu0
  %819 = vmatprep.mubr.f32.mxu0 0.0
  %820 = vmatmul.mubr.f32.gmra.mxu0 %v644
  %v821 = vpop.f32.mrf.mxu0
  %v822 = vadd.f32 %v623, %v821
  %v823 = vpop.f32.mrf.mxu0
  %824 = vmatprep.mubr.f32.mxu0 0.0
  %825 = vmatmul.mubr.f32.gmra.mxu0 %v647
  %v826 = vpop.f32.mrf.mxu0
  %v827 = vadd.f32 %v628, %v826
  %v828 = vpop.f32.mrf.mxu0
  %829 = vmatprep.mubr.f32.mxu0 0.0
  %830 = vmatmul.mubr.f32.gmra.mxu0 %v650
  %v831 = vpop.f32.mrf.mxu0
  %v832 = vadd.f32 %v633, %v831
  %v833 = vpop.f32.mrf.mxu0
  %834 = vmatprep.mubr.f32.mxu0 0.0
  %835 = vmatmul.mubr.f32.gmra.mxu0 %v653
  %v836 = vpop.f32.mrf.mxu0
  %v837 = vadd.f32 %v638, %v836
  %v838 = vpop.f32.mrf.mxu0
  %839 = vdwg.mxu0
  %v840 = vmul.f32 %v722, 0.5
  %v841 = vmul.f32 %v724, 0.5
  %v842 = vmul.f32 %v817, 0.5
  %v843 = vmul.f32 %v728, 0.5
  %v844 = vmul.f32 %v730, 0.5
  %v845 = vmul.f32 %v822, 0.5
  %v846 = vmul.f32 %v734, 0.5
  %v847 = vmul.f32 %v736, 0.5
  %v848 = vmul.f32 %v827, 0.5
  %v849 = vmul.f32 %v740, 0.5
  %v850 = vmul.f32 %v742, 0.5
  %v851 = vmul.f32 %v832, 0.5
  %v852 = vmul.f32 %v746, 0.5
  %v853 = vmul.f32 %v748, 0.5
  %v854 = vmul.f32 %v837, 0.5
  %v855 = vtanh.pop %v840
  %v856 = vtanh.pop %v841
  %v857 = vtanh.pop %v842
  %v858 = vtanh.pop %v843
  %v859 = vtanh.pop %v844
  %v860 = vtanh.pop %v845
  %v861 = vtanh.pop %v846
  %v862 = vtanh.pop %v847
  %v863 = vtanh.pop %v848
  %v864 = vtanh.pop %v849
  %v865 = vtanh.pop %v850
  %v866 = vtanh.pop %v851
  %v867 = vtanh.pop %v852
  %v868 = vtanh.pop %v853
  %v869 = vtanh.pop %v854
  %v870 = vmul.f32 %v855, 0.5
  %v871 = vmul.f32 %v856, 0.5
  %v872 = vmul.f32 %v857, 0.5
  %v873 = vmul.f32 %v858, 0.5
  %v874 = vmul.f32 %v859, 0.5
  %v875 = vmul.f32 %v860, 0.5
  %v876 = vmul.f32 %v861, 0.5
  %v877 = vmul.f32 %v862, 0.5
  %v878 = vmul.f32 %v863, 0.5
  %v879 = vmul.f32 %v864, 0.5
  %v880 = vmul.f32 %v865, 0.5
  %v881 = vmul.f32 %v866, 0.5
  %v882 = vmul.f32 %v867, 0.5
  %v883 = vmul.f32 %v868, 0.5
  %v884 = vmul.f32 %v869, 0.5
  %v885 = vadd.f32 %v870, 0.5
  %v886 = vadd.f32 %v871, 0.5
  %v887 = vadd.f32 %v872, 0.5
  %v888 = vadd.f32 %v873, 0.5
  %v889 = vadd.f32 %v874, 0.5
  %v890 = vadd.f32 %v875, 0.5
  %v891 = vadd.f32 %v876, 0.5
  %v892 = vadd.f32 %v877, 0.5
  %v893 = vadd.f32 %v878, 0.5
  %v894 = vadd.f32 %v879, 0.5
  %v895 = vadd.f32 %v880, 0.5
  %v896 = vadd.f32 %v881, 0.5
  %v897 = vadd.f32 %v882, 0.5
  %v898 = vadd.f32 %v883, 0.5
  %v899 = vadd.f32 %v884, 0.5
  %v900 = vmul.f32 %v722, %v885
  %v901 = vmul.f32 %v724, %v886
  %v902 = vmul.f32 %v817, %v887
  %v903 = vmul.f32 %v728, %v888
  %v904 = vmul.f32 %v730, %v889
  %v905 = vmul.f32 %v822, %v890
  %v906 = vmul.f32 %v734, %v891
  %v907 = vmul.f32 %v736, %v892
  %v908 = vmul.f32 %v827, %v893
  %v909 = vmul.f32 %v740, %v894
  %v910 = vmul.f32 %v742, %v895
  %v911 = vmul.f32 %v832, %v896
  %v912 = vmul.f32 %v746, %v897
  %v913 = vmul.f32 %v748, %v898
  %v914 = vmul.f32 %v837, %v899
  %s915 = scalar_lea.vmem %s2, 80
  %v916 = vld [vmem:[%s915] sm:$0xff]
  %v917 = vld [vmem:[%s915 + $0x8] sm:$0xff]
  %v918 = vld [vmem:[%s915 + $0x10] sm:$0xff]
  %v919 = vld [vmem:[%s915 + $0x18] sm:$0xff]
  %v920 = vld [vmem:[%s915 + $0x20] sm:$0xff]
  %s921 = scalar_lea.vmem %s4, 120
  %v922 = vld [vmem:[%s921] sm:$0xff]
  %v923 = vld [vmem:[%s921 + $0x8] sm:$0xff]
  %v924 = vld [vmem:[%s921 + $0x10] sm:$0xff]
  %v925 = vld [vmem:[%s921 + $0x18] sm:$0xff]
  %v926 = vld [vmem:[%s921 + $0x20] sm:$0xff]
  %928 = vset.pattern.permute.xlu0 0
  %929 = vperm.xlu0 %928, %v922
  %v930 = vpop.permute.xlu0 %929
  %933 = vset.pattern.permute.xlu0 0
  %934 = vperm.xlu0 %933, %v923
  %v935 = vpop.permute.xlu0 %934
  %938 = vset.pattern.permute.xlu0 0
  %939 = vperm.xlu0 %938, %v924
  %v940 = vpop.permute.xlu0 %939
  %943 = vset.pattern.permute.xlu0 0
  %944 = vperm.xlu0 %943, %v925
  %v945 = vpop.permute.xlu0 %944
  %948 = vset.pattern.permute.xlu0 0
  %949 = vperm.xlu0 %948, %v926
  %v950 = vpop.permute.xlu0 %949
  %v953 = vsel %vm327, %v916, 0
  %v956 = vsel %vm327, %v917, 0
  %v959 = vsel %vm327, %v918, 0
  %v962 = vsel %vm327, %v919, 0
  %v965 = vsel %vm327, %v920, 0
  %967 = vmatprep.subr.mxu0 0.0
  %968 = vmatpush1.msra.mxu0 0.0
  %969 = vmatprep.subr.mxu0 0.0
  %970 = vmatpush1.msra.mxu0 0.0
  %971 = vmatprep.subr.mxu0 0.0
  %972 = vmatpush1.msra.mxu0 0.0
  %973 = vmatprep.subr.mxu0 0.0
  %974 = vmatpush1.msra.mxu0 0.0
  %975 = vmatprep.subr.mxu0 0.0
  %976 = vmatpush1.msra.mxu0 0.0
  %977 = vmatprep.subr.mxu0 0.0
  %978 = vmatpush1.msra.mxu0 0.0
  %979 = vmatprep.subr.mxu0 0.0
  %980 = vmatpush1.msra.mxu0 0.0
  %981 = vmatprep.subr.mxu0 0.0
  %982 = vmatpush1.msra.mxu0 0.0
  %983 = vmatprep.subr.mxu0 0.0
  %984 = vmatpush1.msra.mxu0 0.0
  %985 = vmatprep.subr.mxu0 0.0
  %986 = vmatpush1.msra.mxu0 0.0
  %987 = vmatprep.subr.mxu0 0.0
  %988 = vmatpush1.msra.mxu0 0.0
  %989 = vmatprep.subr.mxu0 %v913
  %990 = vmatpush1.msra.mxu0 %v912
  %991 = vmatprep.subr.mxu0 %v910
  %992 = vmatpush1.msra.mxu0 %v909
  %993 = vmatprep.subr.mxu0 %v907
  %994 = vmatpush1.msra.mxu0 %v906
  %995 = vmatprep.subr.mxu0 %v904
  %996 = vmatpush1.msra.mxu0 %v903
  %997 = vmatprep.subr.mxu0 %v901
  %998 = vmatpush1.msra.mxu0 %v900
  %999 = vmatprep.subr.mxu0 0.0
  %1000 = vmatpush2.msra.mxu0 0.0
  %1001 = vmatprep.subr.mxu0 0.0
  %1002 = vmatpush2.msra.mxu0 0.0
  %1003 = vmatprep.subr.mxu0 0.0
  %1004 = vmatpush2.msra.mxu0 0.0
  %1005 = vmatprep.subr.mxu0 0.0
  %1006 = vmatpush2.msra.mxu0 0.0
  %1007 = vmatprep.subr.mxu0 0.0
  %1008 = vmatpush2.msra.mxu0 0.0
  %1009 = vmatprep.subr.mxu0 0.0
  %1010 = vmatpush2.msra.mxu0 0.0
  %1011 = vmatprep.subr.mxu0 0.0
  %1012 = vmatpush2.msra.mxu0 0.0
  %1013 = vmatprep.subr.mxu0 0.0
  %1014 = vmatpush2.msra.mxu0 0.0
  %1015 = vmatprep.subr.mxu0 0.0
  %1016 = vmatpush2.msra.mxu0 0.0
  %1017 = vmatprep.subr.mxu0 0.0
  %1018 = vmatpush2.msra.mxu0 0.0
  %1019 = vmatprep.subr.mxu0 0.0
  %1020 = vmatpush2.msra.mxu0 0.0
  %1021 = vmatprep.subr.mxu0 0.0
  %1022 = vmatpush2.msra.mxu0 0.0
  %1023 = vmatprep.subr.mxu0 0.0
  %1024 = vmatpush2.msra.mxu0 0.0
  %1025 = vmatprep.subr.mxu0 0.0
  %1026 = vmatpush2.msra.mxu0 0.0
  %1027 = vmatprep.subr.mxu0 0.0
  %1028 = vmatpush2.msra.mxu0 0.0
  %1029 = vmatprep.subr.mxu0 0.0
  %1030 = vmatpush2.msra.mxu0 0.0
  %1031 = vmatprep.mubr.f32.mxu0 0.0
  %1032 = vmatmul.mubr.f32.gmra.mxu0 %v953
  %v1033 = vpop.f32.mrf.mxu0
  %v1034 = vadd.f32 %v930, %v1033
  %v1035 = vpop.f32.mrf.mxu0
  %v1036 = vadd.f32 %v930, %v1035
  %1037 = vmatprep.mubr.f32.mxu0 0.0
  %1038 = vmatmul.mubr.f32.gmra.mxu0 %v956
  %v1039 = vpop.f32.mrf.mxu0
  %v1040 = vadd.f32 %v935, %v1039
  %v1041 = vpop.f32.mrf.mxu0
  %v1042 = vadd.f32 %v935, %v1041
  %1043 = vmatprep.mubr.f32.mxu0 0.0
  %1044 = vmatmul.mubr.f32.gmra.mxu0 %v959
  %v1045 = vpop.f32.mrf.mxu0
  %v1046 = vadd.f32 %v940, %v1045
  %v1047 = vpop.f32.mrf.mxu0
  %v1048 = vadd.f32 %v940, %v1047
  %1049 = vmatprep.mubr.f32.mxu0 0.0
  %1050 = vmatmul.mubr.f32.gmra.mxu0 %v962
  %v1051 = vpop.f32.mrf.mxu0
  %v1052 = vadd.f32 %v945, %v1051
  %v1053 = vpop.f32.mrf.mxu0
  %v1054 = vadd.f32 %v945, %v1053
  %1055 = vmatprep.mubr.f32.mxu0 0.0
  %1056 = vmatmul.mubr.f32.gmra.mxu0 %v965
  %v1057 = vpop.f32.mrf.mxu0
  %v1058 = vadd.f32 %v950, %v1057
  %v1059 = vpop.f32.mrf.mxu0
  %v1060 = vadd.f32 %v950, %v1059
  %1061 = vdwg.mxu0
  %1062 = vmatprep.subr.mxu0 0.0
  %1063 = vmatpush1.msra.mxu0 0.0
  %1064 = vmatprep.subr.mxu0 0.0
  %1065 = vmatpush1.msra.mxu0 0.0
  %1066 = vmatprep.subr.mxu0 0.0
  %1067 = vmatpush1.msra.mxu0 0.0
  %1068 = vmatprep.subr.mxu0 0.0
  %1069 = vmatpush1.msra.mxu0 0.0
  %1070 = vmatprep.subr.mxu0 0.0
  %1071 = vmatpush1.msra.mxu0 0.0
  %1072 = vmatprep.subr.mxu0 0.0
  %1073 = vmatpush1.msra.mxu0 0.0
  %1074 = vmatprep.subr.mxu0 0.0
  %1075 = vmatpush1.msra.mxu0 0.0
  %1076 = vmatprep.subr.mxu0 0.0
  %1077 = vmatpush1.msra.mxu0 0.0
  %1078 = vmatprep.subr.mxu0 0.0
  %1079 = vmatpush1.msra.mxu0 0.0
  %1080 = vmatprep.subr.mxu0 0.0
  %1081 = vmatpush1.msra.mxu0 0.0
  %1082 = vmatprep.subr.mxu0 0.0
  %1083 = vmatpush1.msra.mxu0 0.0
  %1084 = vmatprep.subr.mxu0 0.0
  %1085 = vmatpush1.msra.mxu0 %v914
  %1086 = vmatprep.subr.mxu0 0.0
  %1087 = vmatpush1.msra.mxu0 %v911
  %1088 = vmatprep.subr.mxu0 0.0
  %1089 = vmatpush1.msra.mxu0 %v908
  %1090 = vmatprep.subr.mxu0 0.0
  %1091 = vmatpush1.msra.mxu0 %v905
  %1092 = vmatprep.subr.mxu0 0.0
  %1093 = vmatpush1.msra.mxu0 %v902
  %1094 = vmatprep.subr.mxu0 0.0
  %1095 = vmatpush2.msra.mxu0 0.0
  %1096 = vmatprep.subr.mxu0 0.0
  %1097 = vmatpush2.msra.mxu0 0.0
  %1098 = vmatprep.subr.mxu0 0.0
  %1099 = vmatpush2.msra.mxu0 0.0
  %1100 = vmatprep.subr.mxu0 0.0
  %1101 = vmatpush2.msra.mxu0 0.0
  %1102 = vmatprep.subr.mxu0 0.0
  %1103 = vmatpush2.msra.mxu0 0.0
  %1104 = vmatprep.subr.mxu0 0.0
  %1105 = vmatpush2.msra.mxu0 0.0
  %1106 = vmatprep.subr.mxu0 0.0
  %1107 = vmatpush2.msra.mxu0 0.0
  %1108 = vmatprep.subr.mxu0 0.0
  %1109 = vmatpush2.msra.mxu0 0.0
  %1110 = vmatprep.subr.mxu0 0.0
  %1111 = vmatpush2.msra.mxu0 0.0
  %1112 = vmatprep.subr.mxu0 0.0
  %1113 = vmatpush2.msra.mxu0 0.0
  %1114 = vmatprep.subr.mxu0 0.0
  %1115 = vmatpush2.msra.mxu0 0.0
  %1116 = vmatprep.subr.mxu0 0.0
  %1117 = vmatpush2.msra.mxu0 0.0
  %1118 = vmatprep.subr.mxu0 0.0
  %1119 = vmatpush2.msra.mxu0 0.0
  %1120 = vmatprep.subr.mxu0 0.0
  %1121 = vmatpush2.msra.mxu0 0.0
  %1122 = vmatprep.subr.mxu0 0.0
  %1123 = vmatpush2.msra.mxu0 0.0
  %1124 = vmatprep.subr.mxu0 0.0
  %1125 = vmatpush2.msra.mxu0 0.0
  %1126 = vmatprep.mubr.f32.mxu0 0.0
  %1127 = vmatmul.mubr.f32.gmra.mxu0 %v953
  %v1128 = vpop.f32.mrf.mxu0
  %v1129 = vadd.f32 %v930, %v1128
  %v1130 = vpop.f32.mrf.mxu0
  %1131 = vmatprep.mubr.f32.mxu0 0.0
  %1132 = vmatmul.mubr.f32.gmra.mxu0 %v956
  %v1133 = vpop.f32.mrf.mxu0
  %v1134 = vadd.f32 %v935, %v1133
  %v1135 = vpop.f32.mrf.mxu0
  %1136 = vmatprep.mubr.f32.mxu0 0.0
  %1137 = vmatmul.mubr.f32.gmra.mxu0 %v959
  %v1138 = vpop.f32.mrf.mxu0
  %v1139 = vadd.f32 %v940, %v1138
  %v1140 = vpop.f32.mrf.mxu0
  %1141 = vmatprep.mubr.f32.mxu0 0.0
  %1142 = vmatmul.mubr.f32.gmra.mxu0 %v962
  %v1143 = vpop.f32.mrf.mxu0
  %v1144 = vadd.f32 %v945, %v1143
  %v1145 = vpop.f32.mrf.mxu0
  %1146 = vmatprep.mubr.f32.mxu0 0.0
  %1147 = vmatmul.mubr.f32.gmra.mxu0 %v965
  %v1148 = vpop.f32.mrf.mxu0
  %v1149 = vadd.f32 %v950, %v1148
  %v1150 = vpop.f32.mrf.mxu0
  %1151 = vdwg.mxu0
  %v1152 = vmul.f32 %v1034, 0.5
  %v1153 = vmul.f32 %v1036, 0.5
  %v1154 = vmul.f32 %v1129, 0.5
  %v1155 = vmul.f32 %v1040, 0.5
  %v1156 = vmul.f32 %v1042, 0.5
  %v1157 = vmul.f32 %v1134, 0.5
  %v1158 = vmul.f32 %v1046, 0.5
  %v1159 = vmul.f32 %v1048, 0.5
  %v1160 = vmul.f32 %v1139, 0.5
  %v1161 = vmul.f32 %v1052, 0.5
  %v1162 = vmul.f32 %v1054, 0.5
  %v1163 = vmul.f32 %v1144, 0.5
  %v1164 = vmul.f32 %v1058, 0.5
  %v1165 = vmul.f32 %v1060, 0.5
  %v1166 = vmul.f32 %v1149, 0.5
  %v1167 = vtanh.pop %v1152
  %v1168 = vtanh.pop %v1153
  %v1169 = vtanh.pop %v1154
  %v1170 = vtanh.pop %v1155
  %v1171 = vtanh.pop %v1156
  %v1172 = vtanh.pop %v1157
  %v1173 = vtanh.pop %v1158
  %v1174 = vtanh.pop %v1159
  %v1175 = vtanh.pop %v1160
  %v1176 = vtanh.pop %v1161
  %v1177 = vtanh.pop %v1162
  %v1178 = vtanh.pop %v1163
  %v1179 = vtanh.pop %v1164
  %v1180 = vtanh.pop %v1165
  %v1181 = vtanh.pop %v1166
  %v1182 = vmul.f32 %v1167, 0.5
  %v1183 = vmul.f32 %v1168, 0.5
  %v1184 = vmul.f32 %v1169, 0.5
  %v1185 = vmul.f32 %v1170, 0.5
  %v1186 = vmul.f32 %v1171, 0.5
  %v1187 = vmul.f32 %v1172, 0.5
  %v1188 = vmul.f32 %v1173, 0.5
  %v1189 = vmul.f32 %v1174, 0.5
  %v1190 = vmul.f32 %v1175, 0.5
  %v1191 = vmul.f32 %v1176, 0.5
  %v1192 = vmul.f32 %v1177, 0.5
  %v1193 = vmul.f32 %v1178, 0.5
  %v1194 = vmul.f32 %v1179, 0.5
  %v1195 = vmul.f32 %v1180, 0.5
  %v1196 = vmul.f32 %v1181, 0.5
  %v1197 = vadd.f32 %v1182, 0.5
  %v1198 = vadd.f32 %v1183, 0.5
  %v1199 = vadd.f32 %v1184, 0.5
  %v1200 = vadd.f32 %v1185, 0.5
  %v1201 = vadd.f32 %v1186, 0.5
  %v1202 = vadd.f32 %v1187, 0.5
  %v1203 = vadd.f32 %v1188, 0.5
  %v1204 = vadd.f32 %v1189, 0.5
  %v1205 = vadd.f32 %v1190, 0.5
  %v1206 = vadd.f32 %v1191, 0.5
  %v1207 = vadd.f32 %v1192, 0.5
  %v1208 = vadd.f32 %v1193, 0.5
  %v1209 = vadd.f32 %v1194, 0.5
  %v1210 = vadd.f32 %v1195, 0.5
  %v1211 = vadd.f32 %v1196, 0.5
  %v1212 = vmul.f32 %v1034, %v1197
  %v1213 = vmul.f32 %v1036, %v1198
  %v1214 = vmul.f32 %v1129, %v1199
  %v1215 = vmul.f32 %v1040, %v1200
  %v1216 = vmul.f32 %v1042, %v1201
  %v1217 = vmul.f32 %v1134, %v1202
  %v1218 = vmul.f32 %v1046, %v1203
  %v1219 = vmul.f32 %v1048, %v1204
  %v1220 = vmul.f32 %v1139, %v1205
  %v1221 = vmul.f32 %v1052, %v1206
  %v1222 = vmul.f32 %v1054, %v1207
  %v1223 = vmul.f32 %v1144, %v1208
  %v1224 = vmul.f32 %v1058, %v1209
  %v1225 = vmul.f32 %v1060, %v1210
  %v1226 = vmul.f32 %v1149, %v1211
  %s1227 = scalar_lea.vmem %s2, 120
  %v1228 = vld [vmem:[%s1227] sm:$0xff]
  %v1229 = vld [vmem:[%s1227 + $0x8] sm:$0xff]
  %v1230 = vld [vmem:[%s1227 + $0x10] sm:$0xff]
  %v1231 = vld [vmem:[%s1227 + $0x18] sm:$0xff]
  %v1232 = vld [vmem:[%s1227 + $0x20] sm:$0xff]
  %s1233 = scalar_lea.vmem %s4, 160
  %v1234 = vld [vmem:[%s1233] sm:$0xff]
  %v1235 = vld [vmem:[%s1233 + $0x8] sm:$0xff]
  %v1236 = vld [vmem:[%s1233 + $0x10] sm:$0xff]
  %v1237 = vld [vmem:[%s1233 + $0x18] sm:$0xff]
  %v1238 = vld [vmem:[%s1233 + $0x20] sm:$0xff]
  %1240 = vset.pattern.permute.xlu0 0
  %1241 = vperm.xlu0 %1240, %v1234
  %v1242 = vpop.permute.xlu0 %1241
  %1245 = vset.pattern.permute.xlu0 0
  %1246 = vperm.xlu0 %1245, %v1235
  %v1247 = vpop.permute.xlu0 %1246
  %1250 = vset.pattern.permute.xlu0 0
  %1251 = vperm.xlu0 %1250, %v1236
  %v1252 = vpop.permute.xlu0 %1251
  %1255 = vset.pattern.permute.xlu0 0
  %1256 = vperm.xlu0 %1255, %v1237
  %v1257 = vpop.permute.xlu0 %1256
  %1260 = vset.pattern.permute.xlu0 0
  %1261 = vperm.xlu0 %1260, %v1238
  %v1262 = vpop.permute.xlu0 %1261
  %v1265 = vsel %vm327, %v1228, 0
  %v1268 = vsel %vm327, %v1229, 0
  %v1271 = vsel %vm327, %v1230, 0
  %v1274 = vsel %vm327, %v1231, 0
  %v1277 = vsel %vm327, %v1232, 0
  %1279 = vmatprep.subr.mxu0 0.0
  %1280 = vmatpush1.msra.mxu0 0.0
  %1281 = vmatprep.subr.mxu0 0.0
  %1282 = vmatpush1.msra.mxu0 0.0
  %1283 = vmatprep.subr.mxu0 0.0
  %1284 = vmatpush1.msra.mxu0 0.0
  %1285 = vmatprep.subr.mxu0 0.0
  %1286 = vmatpush1.msra.mxu0 0.0
  %1287 = vmatprep.subr.mxu0 0.0
  %1288 = vmatpush1.msra.mxu0 0.0
  %1289 = vmatprep.subr.mxu0 0.0
  %1290 = vmatpush1.msra.mxu0 0.0
  %1291 = vmatprep.subr.mxu0 0.0
  %1292 = vmatpush1.msra.mxu0 0.0
  %1293 = vmatprep.subr.mxu0 0.0
  %1294 = vmatpush1.msra.mxu0 0.0
  %1295 = vmatprep.subr.mxu0 0.0
  %1296 = vmatpush1.msra.mxu0 0.0
  %1297 = vmatprep.subr.mxu0 0.0
  %1298 = vmatpush1.msra.mxu0 0.0
  %1299 = vmatprep.subr.mxu0 0.0
  %1300 = vmatpush1.msra.mxu0 0.0
  %1301 = vmatprep.subr.mxu0 %v1225
  %1302 = vmatpush1.msra.mxu0 %v1224
  %1303 = vmatprep.subr.mxu0 %v1222
  %1304 = vmatpush1.msra.mxu0 %v1221
  %1305 = vmatprep.subr.mxu0 %v1219
  %1306 = vmatpush1.msra.mxu0 %v1218
  %1307 = vmatprep.subr.mxu0 %v1216
  %1308 = vmatpush1.msra.mxu0 %v1215
  %1309 = vmatprep.subr.mxu0 %v1213
  %1310 = vmatpush1.msra.mxu0 %v1212
  %1311 = vmatprep.subr.mxu0 0.0
  %1312 = vmatpush2.msra.mxu0 0.0
  %1313 = vmatprep.subr.mxu0 0.0
  %1314 = vmatpush2.msra.mxu0 0.0
  %1315 = vmatprep.subr.mxu0 0.0
  %1316 = vmatpush2.msra.mxu0 0.0
  %1317 = vmatprep.subr.mxu0 0.0
  %1318 = vmatpush2.msra.mxu0 0.0
  %1319 = vmatprep.subr.mxu0 0.0
  %1320 = vmatpush2.msra.mxu0 0.0
  %1321 = vmatprep.subr.mxu0 0.0
  %1322 = vmatpush2.msra.mxu0 0.0
  %1323 = vmatprep.subr.mxu0 0.0
  %1324 = vmatpush2.msra.mxu0 0.0
  %1325 = vmatprep.subr.mxu0 0.0
  %1326 = vmatpush2.msra.mxu0 0.0
  %1327 = vmatprep.subr.mxu0 0.0
  %1328 = vmatpush2.msra.mxu0 0.0
  %1329 = vmatprep.subr.mxu0 0.0
  %1330 = vmatpush2.msra.mxu0 0.0
  %1331 = vmatprep.subr.mxu0 0.0
  %1332 = vmatpush2.msra.mxu0 0.0
  %1333 = vmatprep.subr.mxu0 0.0
  %1334 = vmatpush2.msra.mxu0 0.0
  %1335 = vmatprep.subr.mxu0 0.0
  %1336 = vmatpush2.msra.mxu0 0.0
  %1337 = vmatprep.subr.mxu0 0.0
  %1338 = vmatpush2.msra.mxu0 0.0
  %1339 = vmatprep.subr.mxu0 0.0
  %1340 = vmatpush2.msra.mxu0 0.0
  %1341 = vmatprep.subr.mxu0 0.0
  %1342 = vmatpush2.msra.mxu0 0.0
  %1343 = vmatprep.mubr.f32.mxu0 0.0
  %1344 = vmatmul.mubr.f32.gmra.mxu0 %v1265
  %v1345 = vpop.f32.mrf.mxu0
  %v1346 = vadd.f32 %v1242, %v1345
  %v1347 = vpop.f32.mrf.mxu0
  %v1348 = vadd.f32 %v1242, %v1347
  %1349 = vmatprep.mubr.f32.mxu0 0.0
  %1350 = vmatmul.mubr.f32.gmra.mxu0 %v1268
  %v1351 = vpop.f32.mrf.mxu0
  %v1352 = vadd.f32 %v1247, %v1351
  %v1353 = vpop.f32.mrf.mxu0
  %v1354 = vadd.f32 %v1247, %v1353
  %1355 = vmatprep.mubr.f32.mxu0 0.0
  %1356 = vmatmul.mubr.f32.gmra.mxu0 %v1271
  %v1357 = vpop.f32.mrf.mxu0
  %v1358 = vadd.f32 %v1252, %v1357
  %v1359 = vpop.f32.mrf.mxu0
  %v1360 = vadd.f32 %v1252, %v1359
  %1361 = vmatprep.mubr.f32.mxu0 0.0
  %1362 = vmatmul.mubr.f32.gmra.mxu0 %v1274
  %v1363 = vpop.f32.mrf.mxu0
  %v1364 = vadd.f32 %v1257, %v1363
  %v1365 = vpop.f32.mrf.mxu0
  %v1366 = vadd.f32 %v1257, %v1365
  %1367 = vmatprep.mubr.f32.mxu0 0.0
  %1368 = vmatmul.mubr.f32.gmra.mxu0 %v1277
  %v1369 = vpop.f32.mrf.mxu0
  %v1370 = vadd.f32 %v1262, %v1369
  %v1371 = vpop.f32.mrf.mxu0
  %v1372 = vadd.f32 %v1262, %v1371
  %1373 = vdwg.mxu0
  %1374 = vmatprep.subr.mxu0 0.0
  %1375 = vmatpush1.msra.mxu0 0.0
  %1376 = vmatprep.subr.mxu0 0.0
  %1377 = vmatpush1.msra.mxu0 0.0
  %1378 = vmatprep.subr.mxu0 0.0
  %1379 = vmatpush1.msra.mxu0 0.0
  %1380 = vmatprep.subr.mxu0 0.0
  %1381 = vmatpush1.msra.mxu0 0.0
  %1382 = vmatprep.subr.mxu0 0.0
  %1383 = vmatpush1.msra.mxu0 0.0
  %1384 = vmatprep.subr.mxu0 0.0
  %1385 = vmatpush1.msra.mxu0 0.0
  %1386 = vmatprep.subr.mxu0 0.0
  %1387 = vmatpush1.msra.mxu0 0.0
  %1388 = vmatprep.subr.mxu0 0.0
  %1389 = vmatpush1.msra.mxu0 0.0
  %1390 = vmatprep.subr.mxu0 0.0
  %1391 = vmatpush1.msra.mxu0 0.0
  %1392 = vmatprep.subr.mxu0 0.0
  %1393 = vmatpush1.msra.mxu0 0.0
  %1394 = vmatprep.subr.mxu0 0.0
  %1395 = vmatpush1.msra.mxu0 0.0
  %1396 = vmatprep.subr.mxu0 0.0
  %1397 = vmatpush1.msra.mxu0 %v1226
  %1398 = vmatprep.subr.mxu0 0.0
  %1399 = vmatpush1.msra.mxu0 %v1223
  %1400 = vmatprep.subr.mxu0 0.0
  %1401 = vmatpush1.msra.mxu0 %v1220
  %1402 = vmatprep.subr.mxu0 0.0
  %1403 = vmatpush1.msra.mxu0 %v1217
  %1404 = vmatprep.subr.mxu0 0.0
  %1405 = vmatpush1.msra.mxu0 %v1214
  %1406 = vmatprep.subr.mxu0 0.0
  %1407 = vmatpush2.msra.mxu0 0.0
  %1408 = vmatprep.subr.mxu0 0.0
  %1409 = vmatpush2.msra.mxu0 0.0
  %1410 = vmatprep.subr.mxu0 0.0
  %1411 = vmatpush2.msra.mxu0 0.0
  %1412 = vmatprep.subr.mxu0 0.0
  %1413 = vmatpush2.msra.mxu0 0.0
  %1414 = vmatprep.subr.mxu0 0.0
  %1415 = vmatpush2.msra.mxu0 0.0
  %1416 = vmatprep.subr.mxu0 0.0
  %1417 = vmatpush2.msra.mxu0 0.0
  %1418 = vmatprep.subr.mxu0 0.0
  %1419 = vmatpush2.msra.mxu0 0.0
  %1420 = vmatprep.subr.mxu0 0.0
  %1421 = vmatpush2.msra.mxu0 0.0
  %1422 = vmatprep.subr.mxu0 0.0
  %1423 = vmatpush2.msra.mxu0 0.0
  %1424 = vmatprep.subr.mxu0 0.0
  %1425 = vmatpush2.msra.mxu0 0.0
  %1426 = vmatprep.subr.mxu0 0.0
  %1427 = vmatpush2.msra.mxu0 0.0
  %1428 = vmatprep.subr.mxu0 0.0
  %1429 = vmatpush2.msra.mxu0 0.0
  %1430 = vmatprep.subr.mxu0 0.0
  %1431 = vmatpush2.msra.mxu0 0.0
  %1432 = vmatprep.subr.mxu0 0.0
  %1433 = vmatpush2.msra.mxu0 0.0
  %1434 = vmatprep.subr.mxu0 0.0
  %1435 = vmatpush2.msra.mxu0 0.0
  %1436 = vmatprep.subr.mxu0 0.0
  %1437 = vmatpush2.msra.mxu0 0.0
  %1438 = vmatprep.mubr.f32.mxu0 0.0
  %1439 = vmatmul.mubr.f32.gmra.mxu0 %v1265
  %v1440 = vpop.f32.mrf.mxu0
  %v1441 = vadd.f32 %v1242, %v1440
  %v1442 = vpop.f32.mrf.mxu0
  %1443 = vmatprep.mubr.f32.mxu0 0.0
  %1444 = vmatmul.mubr.f32.gmra.mxu0 %v1268
  %v1445 = vpop.f32.mrf.mxu0
  %v1446 = vadd.f32 %v1247, %v1445
  %v1447 = vpop.f32.mrf.mxu0
  %1448 = vmatprep.mubr.f32.mxu0 0.0
  %1449 = vmatmul.mubr.f32.gmra.mxu0 %v1271
  %v1450 = vpop.f32.mrf.mxu0
  %v1451 = vadd.f32 %v1252, %v1450
  %v1452 = vpop.f32.mrf.mxu0
  %1453 = vmatprep.mubr.f32.mxu0 0.0
  %1454 = vmatmul.mubr.f32.gmra.mxu0 %v1274
  %v1455 = vpop.f32.mrf.mxu0
  %v1456 = vadd.f32 %v1257, %v1455
  %v1457 = vpop.f32.mrf.mxu0
  %1458 = vmatprep.mubr.f32.mxu0 0.0
  %1459 = vmatmul.mubr.f32.gmra.mxu0 %v1277
  %v1460 = vpop.f32.mrf.mxu0
  %v1461 = vadd.f32 %v1262, %v1460
  %v1462 = vpop.f32.mrf.mxu0
  %1463 = vdwg.mxu0
  %v1464 = vmul.f32 %v1346, 0.5
  %v1465 = vmul.f32 %v1348, 0.5
  %v1466 = vmul.f32 %v1441, 0.5
  %v1467 = vmul.f32 %v1352, 0.5
  %v1468 = vmul.f32 %v1354, 0.5
  %v1469 = vmul.f32 %v1446, 0.5
  %v1470 = vmul.f32 %v1358, 0.5
  %v1471 = vmul.f32 %v1360, 0.5
  %v1472 = vmul.f32 %v1451, 0.5
  %v1473 = vmul.f32 %v1364, 0.5
  %v1474 = vmul.f32 %v1366, 0.5
  %v1475 = vmul.f32 %v1456, 0.5
  %v1476 = vmul.f32 %v1370, 0.5
  %v1477 = vmul.f32 %v1372, 0.5
  %v1478 = vmul.f32 %v1461, 0.5
  %v1479 = vtanh.pop %v1464
  %v1480 = vtanh.pop %v1465
  %v1481 = vtanh.pop %v1466
  %v1482 = vtanh.pop %v1467
  %v1483 = vtanh.pop %v1468
  %v1484 = vtanh.pop %v1469
  %v1485 = vtanh.pop %v1470
  %v1486 = vtanh.pop %v1471
  %v1487 = vtanh.pop %v1472
  %v1488 = vtanh.pop %v1473
  %v1489 = vtanh.pop %v1474
  %v1490 = vtanh.pop %v1475
  %v1491 = vtanh.pop %v1476
  %v1492 = vtanh.pop %v1477
  %v1493 = vtanh.pop %v1478
  %v1494 = vmul.f32 %v1479, 0.5
  %v1495 = vmul.f32 %v1480, 0.5
  %v1496 = vmul.f32 %v1481, 0.5
  %v1497 = vmul.f32 %v1482, 0.5
  %v1498 = vmul.f32 %v1483, 0.5
  %v1499 = vmul.f32 %v1484, 0.5
  %v1500 = vmul.f32 %v1485, 0.5
  %v1501 = vmul.f32 %v1486, 0.5
  %v1502 = vmul.f32 %v1487, 0.5
  %v1503 = vmul.f32 %v1488, 0.5
  %v1504 = vmul.f32 %v1489, 0.5
  %v1505 = vmul.f32 %v1490, 0.5
  %v1506 = vmul.f32 %v1491, 0.5
  %v1507 = vmul.f32 %v1492, 0.5
  %v1508 = vmul.f32 %v1493, 0.5
  %v1509 = vadd.f32 %v1494, 0.5
  %v1510 = vadd.f32 %v1495, 0.5
  %v1511 = vadd.f32 %v1496, 0.5
  %v1512 = vadd.f32 %v1497, 0.5
  %v1513 = vadd.f32 %v1498, 0.5
  %v1514 = vadd.f32 %v1499, 0.5
  %v1515 = vadd.f32 %v1500, 0.5
  %v1516 = vadd.f32 %v1501, 0.5
  %v1517 = vadd.f32 %v1502, 0.5
  %v1518 = vadd.f32 %v1503, 0.5
  %v1519 = vadd.f32 %v1504, 0.5
  %v1520 = vadd.f32 %v1505, 0.5
  %v1521 = vadd.f32 %v1506, 0.5
  %v1522 = vadd.f32 %v1507, 0.5
  %v1523 = vadd.f32 %v1508, 0.5
  %v1524 = vmul.f32 %v1346, %v1509
  %v1525 = vmul.f32 %v1348, %v1510
  %v1526 = vmul.f32 %v1441, %v1511
  %v1527 = vmul.f32 %v1352, %v1512
  %v1528 = vmul.f32 %v1354, %v1513
  %v1529 = vmul.f32 %v1446, %v1514
  %v1530 = vmul.f32 %v1358, %v1515
  %v1531 = vmul.f32 %v1360, %v1516
  %v1532 = vmul.f32 %v1451, %v1517
  %v1533 = vmul.f32 %v1364, %v1518
  %v1534 = vmul.f32 %v1366, %v1519
  %v1535 = vmul.f32 %v1456, %v1520
  %v1536 = vmul.f32 %v1370, %v1521
  %v1537 = vmul.f32 %v1372, %v1522
  %v1538 = vmul.f32 %v1461, %v1523
  %s1539 = scalar_lea.vmem %s2, 160
  %v1540 = vld [vmem:[%s1539] sm:$0xff]
  %v1541 = vld [vmem:[%s1539 + $0x8] sm:$0xff]
  %v1542 = vld [vmem:[%s1539 + $0x10] sm:$0xff]
  %v1543 = vld [vmem:[%s1539 + $0x18] sm:$0xff]
  %v1544 = vld [vmem:[%s1539 + $0x20] sm:$0xff]
  %s1545 = scalar_lea.vmem %s4, 200
  %v1546 = vld [vmem:[%s1545] sm:$0xff]
  %v1547 = vld [vmem:[%s1545 + $0x8] sm:$0xff]
  %v1548 = vld [vmem:[%s1545 + $0x10] sm:$0xff]
  %v1549 = vld [vmem:[%s1545 + $0x18] sm:$0xff]
  %v1550 = vld [vmem:[%s1545 + $0x20] sm:$0xff]
  %1552 = vset.pattern.permute.xlu0 0
  %1553 = vperm.xlu0 %1552, %v1546
  %v1554 = vpop.permute.xlu0 %1553
  %1557 = vset.pattern.permute.xlu0 0
  %1558 = vperm.xlu0 %1557, %v1547
  %v1559 = vpop.permute.xlu0 %1558
  %1562 = vset.pattern.permute.xlu0 0
  %1563 = vperm.xlu0 %1562, %v1548
  %v1564 = vpop.permute.xlu0 %1563
  %1567 = vset.pattern.permute.xlu0 0
  %1568 = vperm.xlu0 %1567, %v1549
  %v1569 = vpop.permute.xlu0 %1568
  %1572 = vset.pattern.permute.xlu0 0
  %1573 = vperm.xlu0 %1572, %v1550
  %v1574 = vpop.permute.xlu0 %1573
  %v1577 = vsel %vm327, %v1540, 0
  %v1580 = vsel %vm327, %v1541, 0
  %v1583 = vsel %vm327, %v1542, 0
  %v1586 = vsel %vm327, %v1543, 0
  %v1589 = vsel %vm327, %v1544, 0
  %1591 = vmatprep.subr.mxu0 0.0
  %1592 = vmatpush1.msra.mxu0 0.0
  %1593 = vmatprep.subr.mxu0 0.0
  %1594 = vmatpush1.msra.mxu0 0.0
  %1595 = vmatprep.subr.mxu0 0.0
  %1596 = vmatpush1.msra.mxu0 0.0
  %1597 = vmatprep.subr.mxu0 0.0
  %1598 = vmatpush1.msra.mxu0 0.0
  %1599 = vmatprep.subr.mxu0 0.0
  %1600 = vmatpush1.msra.mxu0 0.0
  %1601 = vmatprep.subr.mxu0 0.0
  %1602 = vmatpush1.msra.mxu0 0.0
  %1603 = vmatprep.subr.mxu0 0.0
  %1604 = vmatpush1.msra.mxu0 0.0
  %1605 = vmatprep.subr.mxu0 0.0
  %1606 = vmatpush1.msra.mxu0 0.0
  %1607 = vmatprep.subr.mxu0 0.0
  %1608 = vmatpush1.msra.mxu0 0.0
  %1609 = vmatprep.subr.mxu0 0.0
  %1610 = vmatpush1.msra.mxu0 0.0
  %1611 = vmatprep.subr.mxu0 0.0
  %1612 = vmatpush1.msra.mxu0 0.0
  %1613 = vmatprep.subr.mxu0 %v1537
  %1614 = vmatpush1.msra.mxu0 %v1536
  %1615 = vmatprep.subr.mxu0 %v1534
  %1616 = vmatpush1.msra.mxu0 %v1533
  %1617 = vmatprep.subr.mxu0 %v1531
  %1618 = vmatpush1.msra.mxu0 %v1530
  %1619 = vmatprep.subr.mxu0 %v1528
  %1620 = vmatpush1.msra.mxu0 %v1527
  %1621 = vmatprep.subr.mxu0 %v1525
  %1622 = vmatpush1.msra.mxu0 %v1524
  %1623 = vmatprep.subr.mxu0 0.0
  %1624 = vmatpush2.msra.mxu0 0.0
  %1625 = vmatprep.subr.mxu0 0.0
  %1626 = vmatpush2.msra.mxu0 0.0
  %1627 = vmatprep.subr.mxu0 0.0
  %1628 = vmatpush2.msra.mxu0 0.0
  %1629 = vmatprep.subr.mxu0 0.0
  %1630 = vmatpush2.msra.mxu0 0.0
  %1631 = vmatprep.subr.mxu0 0.0
  %1632 = vmatpush2.msra.mxu0 0.0
  %1633 = vmatprep.subr.mxu0 0.0
  %1634 = vmatpush2.msra.mxu0 0.0
  %1635 = vmatprep.subr.mxu0 0.0
  %1636 = vmatpush2.msra.mxu0 0.0
  %1637 = vmatprep.subr.mxu0 0.0
  %1638 = vmatpush2.msra.mxu0 0.0
  %1639 = vmatprep.subr.mxu0 0.0
  %1640 = vmatpush2.msra.mxu0 0.0
  %1641 = vmatprep.subr.mxu0 0.0
  %1642 = vmatpush2.msra.mxu0 0.0
  %1643 = vmatprep.subr.mxu0 0.0
  %1644 = vmatpush2.msra.mxu0 0.0
  %1645 = vmatprep.subr.mxu0 0.0
  %1646 = vmatpush2.msra.mxu0 0.0
  %1647 = vmatprep.subr.mxu0 0.0
  %1648 = vmatpush2.msra.mxu0 0.0
  %1649 = vmatprep.subr.mxu0 0.0
  %1650 = vmatpush2.msra.mxu0 0.0
  %1651 = vmatprep.subr.mxu0 0.0
  %1652 = vmatpush2.msra.mxu0 0.0
  %1653 = vmatprep.subr.mxu0 0.0
  %1654 = vmatpush2.msra.mxu0 0.0
  %1655 = vmatprep.mubr.f32.mxu0 0.0
  %1656 = vmatmul.mubr.f32.gmra.mxu0 %v1577
  %v1657 = vpop.f32.mrf.mxu0
  %v1658 = vadd.f32 %v1554, %v1657
  %v1659 = vpop.f32.mrf.mxu0
  %v1660 = vadd.f32 %v1554, %v1659
  %1661 = vmatprep.mubr.f32.mxu0 0.0
  %1662 = vmatmul.mubr.f32.gmra.mxu0 %v1580
  %v1663 = vpop.f32.mrf.mxu0
  %v1664 = vadd.f32 %v1559, %v1663
  %v1665 = vpop.f32.mrf.mxu0
  %v1666 = vadd.f32 %v1559, %v1665
  %1667 = vmatprep.mubr.f32.mxu0 0.0
  %1668 = vmatmul.mubr.f32.gmra.mxu0 %v1583
  %v1669 = vpop.f32.mrf.mxu0
  %v1670 = vadd.f32 %v1564, %v1669
  %v1671 = vpop.f32.mrf.mxu0
  %v1672 = vadd.f32 %v1564, %v1671
  %1673 = vmatprep.mubr.f32.mxu0 0.0
  %1674 = vmatmul.mubr.f32.gmra.mxu0 %v1586
  %v1675 = vpop.f32.mrf.mxu0
  %v1676 = vadd.f32 %v1569, %v1675
  %v1677 = vpop.f32.mrf.mxu0
  %v1678 = vadd.f32 %v1569, %v1677
  %1679 = vmatprep.mubr.f32.mxu0 0.0
  %1680 = vmatmul.mubr.f32.gmra.mxu0 %v1589
  %v1681 = vpop.f32.mrf.mxu0
  %v1682 = vadd.f32 %v1574, %v1681
  %v1683 = vpop.f32.mrf.mxu0
  %v1684 = vadd.f32 %v1574, %v1683
  %1685 = vdwg.mxu0
  %1686 = vmatprep.subr.mxu0 0.0
  %1687 = vmatpush1.msra.mxu0 0.0
  %1688 = vmatprep.subr.mxu0 0.0
  %1689 = vmatpush1.msra.mxu0 0.0
  %1690 = vmatprep.subr.mxu0 0.0
  %1691 = vmatpush1.msra.mxu0 0.0
  %1692 = vmatprep.subr.mxu0 0.0
  %1693 = vmatpush1.msra.mxu0 0.0
  %1694 = vmatprep.subr.mxu0 0.0
  %1695 = vmatpush1.msra.mxu0 0.0
  %1696 = vmatprep.subr.mxu0 0.0
  %1697 = vmatpush1.msra.mxu0 0.0
  %1698 = vmatprep.subr.mxu0 0.0
  %1699 = vmatpush1.msra.mxu0 0.0
  %1700 = vmatprep.subr.mxu0 0.0
  %1701 = vmatpush1.msra.mxu0 0.0
  %1702 = vmatprep.subr.mxu0 0.0
  %1703 = vmatpush1.msra.mxu0 0.0
  %1704 = vmatprep.subr.mxu0 0.0
  %1705 = vmatpush1.msra.mxu0 0.0
  %1706 = vmatprep.subr.mxu0 0.0
  %1707 = vmatpush1.msra.mxu0 0.0
  %1708 = vmatprep.subr.mxu0 0.0
  %1709 = vmatpush1.msra.mxu0 %v1538
  %1710 = vmatprep.subr.mxu0 0.0
  %1711 = vmatpush1.msra.mxu0 %v1535
  %1712 = vmatprep.subr.mxu0 0.0
  %1713 = vmatpush1.msra.mxu0 %v1532
  %1714 = vmatprep.subr.mxu0 0.0
  %1715 = vmatpush1.msra.mxu0 %v1529
  %1716 = vmatprep.subr.mxu0 0.0
  %1717 = vmatpush1.msra.mxu0 %v1526
  %1718 = vmatprep.subr.mxu0 0.0
  %1719 = vmatpush2.msra.mxu0 0.0
  %1720 = vmatprep.subr.mxu0 0.0
  %1721 = vmatpush2.msra.mxu0 0.0
  %1722 = vmatprep.subr.mxu0 0.0
  %1723 = vmatpush2.msra.mxu0 0.0
  %1724 = vmatprep.subr.mxu0 0.0
  %1725 = vmatpush2.msra.mxu0 0.0
  %1726 = vmatprep.subr.mxu0 0.0
  %1727 = vmatpush2.msra.mxu0 0.0
  %1728 = vmatprep.subr.mxu0 0.0
  %1729 = vmatpush2.msra.mxu0 0.0
  %1730 = vmatprep.subr.mxu0 0.0
  %1731 = vmatpush2.msra.mxu0 0.0
  %1732 = vmatprep.subr.mxu0 0.0
  %1733 = vmatpush2.msra.mxu0 0.0
  %1734 = vmatprep.subr.mxu0 0.0
  %1735 = vmatpush2.msra.mxu0 0.0
  %1736 = vmatprep.subr.mxu0 0.0
  %1737 = vmatpush2.msra.mxu0 0.0
  %1738 = vmatprep.subr.mxu0 0.0
  %1739 = vmatpush2.msra.mxu0 0.0
  %1740 = vmatprep.subr.mxu0 0.0
  %1741 = vmatpush2.msra.mxu0 0.0
  %1742 = vmatprep.subr.mxu0 0.0
  %1743 = vmatpush2.msra.mxu0 0.0
  %1744 = vmatprep.subr.mxu0 0.0
  %1745 = vmatpush2.msra.mxu0 0.0
  %1746 = vmatprep.subr.mxu0 0.0
  %1747 = vmatpush2.msra.mxu0 0.0
  %1748 = vmatprep.subr.mxu0 0.0
  %1749 = vmatpush2.msra.mxu0 0.0
  %1750 = vmatprep.mubr.f32.mxu0 0.0
  %1751 = vmatmul.mubr.f32.gmra.mxu0 %v1577
  %v1752 = vpop.f32.mrf.mxu0
  %v1753 = vadd.f32 %v1554, %v1752
  %v1754 = vpop.f32.mrf.mxu0
  %1755 = vmatprep.mubr.f32.mxu0 0.0
  %1756 = vmatmul.mubr.f32.gmra.mxu0 %v1580
  %v1757 = vpop.f32.mrf.mxu0
  %v1758 = vadd.f32 %v1559, %v1757
  %v1759 = vpop.f32.mrf.mxu0
  %1760 = vmatprep.mubr.f32.mxu0 0.0
  %1761 = vmatmul.mubr.f32.gmra.mxu0 %v1583
  %v1762 = vpop.f32.mrf.mxu0
  %v1763 = vadd.f32 %v1564, %v1762
  %v1764 = vpop.f32.mrf.mxu0
  %1765 = vmatprep.mubr.f32.mxu0 0.0
  %1766 = vmatmul.mubr.f32.gmra.mxu0 %v1586
  %v1767 = vpop.f32.mrf.mxu0
  %v1768 = vadd.f32 %v1569, %v1767
  %v1769 = vpop.f32.mrf.mxu0
  %1770 = vmatprep.mubr.f32.mxu0 0.0
  %1771 = vmatmul.mubr.f32.gmra.mxu0 %v1589
  %v1772 = vpop.f32.mrf.mxu0
  %v1773 = vadd.f32 %v1574, %v1772
  %v1774 = vpop.f32.mrf.mxu0
  %1775 = vdwg.mxu0
  %v1776 = vmul.f32 %v1658, 0.5
  %v1777 = vmul.f32 %v1660, 0.5
  %v1778 = vmul.f32 %v1753, 0.5
  %v1779 = vmul.f32 %v1664, 0.5
  %v1780 = vmul.f32 %v1666, 0.5
  %v1781 = vmul.f32 %v1758, 0.5
  %v1782 = vmul.f32 %v1670, 0.5
  %v1783 = vmul.f32 %v1672, 0.5
  %v1784 = vmul.f32 %v1763, 0.5
  %v1785 = vmul.f32 %v1676, 0.5
  %v1786 = vmul.f32 %v1678, 0.5
  %v1787 = vmul.f32 %v1768, 0.5
  %v1788 = vmul.f32 %v1682, 0.5
  %v1789 = vmul.f32 %v1684, 0.5
  %v1790 = vmul.f32 %v1773, 0.5
  %v1791 = vtanh.pop %v1776
  %v1792 = vtanh.pop %v1777
  %v1793 = vtanh.pop %v1778
  %v1794 = vtanh.pop %v1779
  %v1795 = vtanh.pop %v1780
  %v1796 = vtanh.pop %v1781
  %v1797 = vtanh.pop %v1782
  %v1798 = vtanh.pop %v1783
  %v1799 = vtanh.pop %v1784
  %v1800 = vtanh.pop %v1785
  %v1801 = vtanh.pop %v1786
  %v1802 = vtanh.pop %v1787
  %v1803 = vtanh.pop %v1788
  %v1804 = vtanh.pop %v1789
  %v1805 = vtanh.pop %v1790
  %v1806 = vmul.f32 %v1791, 0.5
  %v1807 = vmul.f32 %v1792, 0.5
  %v1808 = vmul.f32 %v1793, 0.5
  %v1809 = vmul.f32 %v1794, 0.5
  %v1810 = vmul.f32 %v1795, 0.5
  %v1811 = vmul.f32 %v1796, 0.5
  %v1812 = vmul.f32 %v1797, 0.5
  %v1813 = vmul.f32 %v1798, 0.5
  %v1814 = vmul.f32 %v1799, 0.5
  %v1815 = vmul.f32 %v1800, 0.5
  %v1816 = vmul.f32 %v1801, 0.5
  %v1817 = vmul.f32 %v1802, 0.5
  %v1818 = vmul.f32 %v1803, 0.5
  %v1819 = vmul.f32 %v1804, 0.5
  %v1820 = vmul.f32 %v1805, 0.5
  %v1821 = vadd.f32 %v1806, 0.5
  %v1822 = vadd.f32 %v1807, 0.5
  %v1823 = vadd.f32 %v1808, 0.5
  %v1824 = vadd.f32 %v1809, 0.5
  %v1825 = vadd.f32 %v1810, 0.5
  %v1826 = vadd.f32 %v1811, 0.5
  %v1827 = vadd.f32 %v1812, 0.5
  %v1828 = vadd.f32 %v1813, 0.5
  %v1829 = vadd.f32 %v1814, 0.5
  %v1830 = vadd.f32 %v1815, 0.5
  %v1831 = vadd.f32 %v1816, 0.5
  %v1832 = vadd.f32 %v1817, 0.5
  %v1833 = vadd.f32 %v1818, 0.5
  %v1834 = vadd.f32 %v1819, 0.5
  %v1835 = vadd.f32 %v1820, 0.5
  %v1836 = vmul.f32 %v1658, %v1821
  %v1837 = vmul.f32 %v1660, %v1822
  %v1838 = vmul.f32 %v1753, %v1823
  %v1839 = vmul.f32 %v1664, %v1824
  %v1840 = vmul.f32 %v1666, %v1825
  %v1841 = vmul.f32 %v1758, %v1826
  %v1842 = vmul.f32 %v1670, %v1827
  %v1843 = vmul.f32 %v1672, %v1828
  %v1844 = vmul.f32 %v1763, %v1829
  %v1845 = vmul.f32 %v1676, %v1830
  %v1846 = vmul.f32 %v1678, %v1831
  %v1847 = vmul.f32 %v1768, %v1832
  %v1848 = vmul.f32 %v1682, %v1833
  %v1849 = vmul.f32 %v1684, %v1834
  %v1850 = vmul.f32 %v1773, %v1835
  %s1851 = scalar_lea.vmem %s2, 200
  %v1852 = vld [vmem:[%s1851] sm:$0xff]
  %v1853 = vld [vmem:[%s1851 + $0x8] sm:$0xff]
  %v1854 = vld [vmem:[%s1851 + $0x10] sm:$0xff]
  %v1855 = vld [vmem:[%s1851 + $0x18] sm:$0xff]
  %v1856 = vld [vmem:[%s1851 + $0x20] sm:$0xff]
  %s1857 = scalar_lea.vmem %s4, 240
  %v1858 = vld [vmem:[%s1857] sm:$0xff]
  %v1859 = vld [vmem:[%s1857 + $0x8] sm:$0xff]
  %v1860 = vld [vmem:[%s1857 + $0x10] sm:$0xff]
  %v1861 = vld [vmem:[%s1857 + $0x18] sm:$0xff]
  %v1862 = vld [vmem:[%s1857 + $0x20] sm:$0xff]
  %1864 = vset.pattern.permute.xlu0 0
  %1865 = vperm.xlu0 %1864, %v1858
  %v1866 = vpop.permute.xlu0 %1865
  %1869 = vset.pattern.permute.xlu0 0
  %1870 = vperm.xlu0 %1869, %v1859
  %v1871 = vpop.permute.xlu0 %1870
  %1874 = vset.pattern.permute.xlu0 0
  %1875 = vperm.xlu0 %1874, %v1860
  %v1876 = vpop.permute.xlu0 %1875
  %1879 = vset.pattern.permute.xlu0 0
  %1880 = vperm.xlu0 %1879, %v1861
  %v1881 = vpop.permute.xlu0 %1880
  %1884 = vset.pattern.permute.xlu0 0
  %1885 = vperm.xlu0 %1884, %v1862
  %v1886 = vpop.permute.xlu0 %1885
  %v1889 = vsel %vm327, %v1852, 0
  %v1892 = vsel %vm327, %v1853, 0
  %v1895 = vsel %vm327, %v1854, 0
  %v1898 = vsel %vm327, %v1855, 0
  %v1901 = vsel %vm327, %v1856, 0
  %1903 = vmatprep.subr.mxu0 0.0
  %1904 = vmatpush1.msra.mxu0 0.0
  %1905 = vmatprep.subr.mxu0 0.0
  %1906 = vmatpush1.msra.mxu0 0.0
  %1907 = vmatprep.subr.mxu0 0.0
  %1908 = vmatpush1.msra.mxu0 0.0
  %1909 = vmatprep.subr.mxu0 0.0
  %1910 = vmatpush1.msra.mxu0 0.0
  %1911 = vmatprep.subr.mxu0 0.0
  %1912 = vmatpush1.msra.mxu0 0.0
  %1913 = vmatprep.subr.mxu0 0.0
  %1914 = vmatpush1.msra.mxu0 0.0
  %1915 = vmatprep.subr.mxu0 0.0
  %1916 = vmatpush1.msra.mxu0 0.0
  %1917 = vmatprep.subr.mxu0 0.0
  %1918 = vmatpush1.msra.mxu0 0.0
  %1919 = vmatprep.subr.mxu0 0.0
  %1920 = vmatpush1.msra.mxu0 0.0
  %1921 = vmatprep.subr.mxu0 0.0
  %1922 = vmatpush1.msra.mxu0 0.0
  %1923 = vmatprep.subr.mxu0 0.0
  %1924 = vmatpush1.msra.mxu0 0.0
  %1925 = vmatprep.subr.mxu0 %v1849
  %1926 = vmatpush1.msra.mxu0 %v1848
  %1927 = vmatprep.subr.mxu0 %v1846
  %1928 = vmatpush1.msra.mxu0 %v1845
  %1929 = vmatprep.subr.mxu0 %v1843
  %1930 = vmatpush1.msra.mxu0 %v1842
  %1931 = vmatprep.subr.mxu0 %v1840
  %1932 = vmatpush1.msra.mxu0 %v1839
  %1933 = vmatprep.subr.mxu0 %v1837
  %1934 = vmatpush1.msra.mxu0 %v1836
  %1935 = vmatprep.subr.mxu0 0.0
  %1936 = vmatpush2.msra.mxu0 0.0
  %1937 = vmatprep.subr.mxu0 0.0
  %1938 = vmatpush2.msra.mxu0 0.0
  %1939 = vmatprep.subr.mxu0 0.0
  %1940 = vmatpush2.msra.mxu0 0.0
  %1941 = vmatprep.subr.mxu0 0.0
  %1942 = vmatpush2.msra.mxu0 0.0
  %1943 = vmatprep.subr.mxu0 0.0
  %1944 = vmatpush2.msra.mxu0 0.0
  %1945 = vmatprep.subr.mxu0 0.0
  %1946 = vmatpush2.msra.mxu0 0.0
  %1947 = vmatprep.subr.mxu0 0.0
  %1948 = vmatpush2.msra.mxu0 0.0
  %1949 = vmatprep.subr.mxu0 0.0
  %1950 = vmatpush2.msra.mxu0 0.0
  %1951 = vmatprep.subr.mxu0 0.0
  %1952 = vmatpush2.msra.mxu0 0.0
  %1953 = vmatprep.subr.mxu0 0.0
  %1954 = vmatpush2.msra.mxu0 0.0
  %1955 = vmatprep.subr.mxu0 0.0
  %1956 = vmatpush2.msra.mxu0 0.0
  %1957 = vmatprep.subr.mxu0 0.0
  %1958 = vmatpush2.msra.mxu0 0.0
  %1959 = vmatprep.subr.mxu0 0.0
  %1960 = vmatpush2.msra.mxu0 0.0
  %1961 = vmatprep.subr.mxu0 0.0
  %1962 = vmatpush2.msra.mxu0 0.0
  %1963 = vmatprep.subr.mxu0 0.0
  %1964 = vmatpush2.msra.mxu0 0.0
  %1965 = vmatprep.subr.mxu0 0.0
  %1966 = vmatpush2.msra.mxu0 0.0
  %1967 = vmatprep.mubr.f32.mxu0 0.0
  %1968 = vmatmul.mubr.f32.gmra.mxu0 %v1889
  %v1969 = vpop.f32.mrf.mxu0
  %v1970 = vadd.f32 %v1866, %v1969
  %v1971 = vpop.f32.mrf.mxu0
  %v1972 = vadd.f32 %v1866, %v1971
  %1973 = vmatprep.mubr.f32.mxu0 0.0
  %1974 = vmatmul.mubr.f32.gmra.mxu0 %v1892
  %v1975 = vpop.f32.mrf.mxu0
  %v1976 = vadd.f32 %v1871, %v1975
  %v1977 = vpop.f32.mrf.mxu0
  %v1978 = vadd.f32 %v1871, %v1977
  %1979 = vmatprep.mubr.f32.mxu0 0.0
  %1980 = vmatmul.mubr.f32.gmra.mxu0 %v1895
  %v1981 = vpop.f32.mrf.mxu0
  %v1982 = vadd.f32 %v1876, %v1981
  %v1983 = vpop.f32.mrf.mxu0
  %v1984 = vadd.f32 %v1876, %v1983
  %1985 = vmatprep.mubr.f32.mxu0 0.0
  %1986 = vmatmul.mubr.f32.gmra.mxu0 %v1898
  %v1987 = vpop.f32.mrf.mxu0
  %v1988 = vadd.f32 %v1881, %v1987
  %v1989 = vpop.f32.mrf.mxu0
  %v1990 = vadd.f32 %v1881, %v1989
  %1991 = vmatprep.mubr.f32.mxu0 0.0
  %1992 = vmatmul.mubr.f32.gmra.mxu0 %v1901
  %v1993 = vpop.f32.mrf.mxu0
  %v1994 = vadd.f32 %v1886, %v1993
  %v1995 = vpop.f32.mrf.mxu0
  %v1996 = vadd.f32 %v1886, %v1995
  %1997 = vdwg.mxu0
  %1998 = vmatprep.subr.mxu0 0.0
  %1999 = vmatpush1.msra.mxu0 0.0
  %2000 = vmatprep.subr.mxu0 0.0
  %2001 = vmatpush1.msra.mxu0 0.0
  %2002 = vmatprep.subr.mxu0 0.0
  %2003 = vmatpush1.msra.mxu0 0.0
  %2004 = vmatprep.subr.mxu0 0.0
  %2005 = vmatpush1.msra.mxu0 0.0
  %2006 = vmatprep.subr.mxu0 0.0
  %2007 = vmatpush1.msra.mxu0 0.0
  %2008 = vmatprep.subr.mxu0 0.0
  %2009 = vmatpush1.msra.mxu0 0.0
  %2010 = vmatprep.subr.mxu0 0.0
  %2011 = vmatpush1.msra.mxu0 0.0
  %2012 = vmatprep.subr.mxu0 0.0
  %2013 = vmatpush1.msra.mxu0 0.0
  %2014 = vmatprep.subr.mxu0 0.0
  %2015 = vmatpush1.msra.mxu0 0.0
  %2016 = vmatprep.subr.mxu0 0.0
  %2017 = vmatpush1.msra.mxu0 0.0
  %2018 = vmatprep.subr.mxu0 0.0
  %2019 = vmatpush1.msra.mxu0 0.0
  %2020 = vmatprep.subr.mxu0 0.0
  %2021 = vmatpush1.msra.mxu0 %v1850
  %2022 = vmatprep.subr.mxu0 0.0
  %2023 = vmatpush1.msra.mxu0 %v1847
  %2024 = vmatprep.subr.mxu0 0.0
  %2025 = vmatpush1.msra.mxu0 %v1844
  %2026 = vmatprep.subr.mxu0 0.0
  %2027 = vmatpush1.msra.mxu0 %v1841
  %2028 = vmatprep.subr.mxu0 0.0
  %2029 = vmatpush1.msra.mxu0 %v1838
  %2030 = vmatprep.subr.mxu0 0.0
  %2031 = vmatpush2.msra.mxu0 0.0
  %2032 = vmatprep.subr.mxu0 0.0
  %2033 = vmatpush2.msra.mxu0 0.0
  %2034 = vmatprep.subr.mxu0 0.0
  %2035 = vmatpush2.msra.mxu0 0.0
  %2036 = vmatprep.subr.mxu0 0.0
  %2037 = vmatpush2.msra.mxu0 0.0
  %2038 = vmatprep.subr.mxu0 0.0
  %2039 = vmatpush2.msra.mxu0 0.0
  %2040 = vmatprep.subr.mxu0 0.0
  %2041 = vmatpush2.msra.mxu0 0.0
  %2042 = vmatprep.subr.mxu0 0.0
  %2043 = vmatpush2.msra.mxu0 0.0
  %2044 = vmatprep.subr.mxu0 0.0
  %2045 = vmatpush2.msra.mxu0 0.0
  %2046 = vmatprep.subr.mxu0 0.0
  %2047 = vmatpush2.msra.mxu0 0.0
  %2048 = vmatprep.subr.mxu0 0.0
  %2049 = vmatpush2.msra.mxu0 0.0
  %2050 = vmatprep.subr.mxu0 0.0
  %2051 = vmatpush2.msra.mxu0 0.0
  %2052 = vmatprep.subr.mxu0 0.0
  %2053 = vmatpush2.msra.mxu0 0.0
  %2054 = vmatprep.subr.mxu0 0.0
  %2055 = vmatpush2.msra.mxu0 0.0
  %2056 = vmatprep.subr.mxu0 0.0
  %2057 = vmatpush2.msra.mxu0 0.0
  %2058 = vmatprep.subr.mxu0 0.0
  %2059 = vmatpush2.msra.mxu0 0.0
  %2060 = vmatprep.subr.mxu0 0.0
  %2061 = vmatpush2.msra.mxu0 0.0
  %2062 = vmatprep.mubr.f32.mxu0 0.0
  %2063 = vmatmul.mubr.f32.gmra.mxu0 %v1889
  %v2064 = vpop.f32.mrf.mxu0
  %v2065 = vadd.f32 %v1866, %v2064
  %v2066 = vpop.f32.mrf.mxu0
  %2067 = vmatprep.mubr.f32.mxu0 0.0
  %2068 = vmatmul.mubr.f32.gmra.mxu0 %v1892
  %v2069 = vpop.f32.mrf.mxu0
  %v2070 = vadd.f32 %v1871, %v2069
  %v2071 = vpop.f32.mrf.mxu0
  %2072 = vmatprep.mubr.f32.mxu0 0.0
  %2073 = vmatmul.mubr.f32.gmra.mxu0 %v1895
  %v2074 = vpop.f32.mrf.mxu0
  %v2075 = vadd.f32 %v1876, %v2074
  %v2076 = vpop.f32.mrf.mxu0
  %2077 = vmatprep.mubr.f32.mxu0 0.0
  %2078 = vmatmul.mubr.f32.gmra.mxu0 %v1898
  %v2079 = vpop.f32.mrf.mxu0
  %v2080 = vadd.f32 %v1881, %v2079
  %v2081 = vpop.f32.mrf.mxu0
  %2082 = vmatprep.mubr.f32.mxu0 0.0
  %2083 = vmatmul.mubr.f32.gmra.mxu0 %v1901
  %v2084 = vpop.f32.mrf.mxu0
  %v2085 = vadd.f32 %v1886, %v2084
  %v2086 = vpop.f32.mrf.mxu0
  %2087 = vdwg.mxu0
  %v2088 = vmul.f32 %v1970, 0.5
  %v2089 = vmul.f32 %v1972, 0.5
  %v2090 = vmul.f32 %v2065, 0.5
  %v2091 = vmul.f32 %v1976, 0.5
  %v2092 = vmul.f32 %v1978, 0.5
  %v2093 = vmul.f32 %v2070, 0.5
  %v2094 = vmul.f32 %v1982, 0.5
  %v2095 = vmul.f32 %v1984, 0.5
  %v2096 = vmul.f32 %v2075, 0.5
  %v2097 = vmul.f32 %v1988, 0.5
  %v2098 = vmul.f32 %v1990, 0.5
  %v2099 = vmul.f32 %v2080, 0.5
  %v2100 = vmul.f32 %v1994, 0.5
  %v2101 = vmul.f32 %v1996, 0.5
  %v2102 = vmul.f32 %v2085, 0.5
  %v2103 = vtanh.pop %v2088
  %v2104 = vtanh.pop %v2089
  %v2105 = vtanh.pop %v2090
  %v2106 = vtanh.pop %v2091
  %v2107 = vtanh.pop %v2092
  %v2108 = vtanh.pop %v2093
  %v2109 = vtanh.pop %v2094
  %v2110 = vtanh.pop %v2095
  %v2111 = vtanh.pop %v2096
  %v2112 = vtanh.pop %v2097
  %v2113 = vtanh.pop %v2098
  %v2114 = vtanh.pop %v2099
  %v2115 = vtanh.pop %v2100
  %v2116 = vtanh.pop %v2101
  %v2117 = vtanh.pop %v2102
  %v2118 = vmul.f32 %v2103, 0.5
  %v2119 = vmul.f32 %v2104, 0.5
  %v2120 = vmul.f32 %v2105, 0.5
  %v2121 = vmul.f32 %v2106, 0.5
  %v2122 = vmul.f32 %v2107, 0.5
  %v2123 = vmul.f32 %v2108, 0.5
  %v2124 = vmul.f32 %v2109, 0.5
  %v2125 = vmul.f32 %v2110, 0.5
  %v2126 = vmul.f32 %v2111, 0.5
  %v2127 = vmul.f32 %v2112, 0.5
  %v2128 = vmul.f32 %v2113, 0.5
  %v2129 = vmul.f32 %v2114, 0.5
  %v2130 = vmul.f32 %v2115, 0.5
  %v2131 = vmul.f32 %v2116, 0.5
  %v2132 = vmul.f32 %v2117, 0.5
  %v2133 = vadd.f32 %v2118, 0.5
  %v2134 = vadd.f32 %v2119, 0.5
  %v2135 = vadd.f32 %v2120, 0.5
  %v2136 = vadd.f32 %v2121, 0.5
  %v2137 = vadd.f32 %v2122, 0.5
  %v2138 = vadd.f32 %v2123, 0.5
  %v2139 = vadd.f32 %v2124, 0.5
  %v2140 = vadd.f32 %v2125, 0.5
  %v2141 = vadd.f32 %v2126, 0.5
  %v2142 = vadd.f32 %v2127, 0.5
  %v2143 = vadd.f32 %v2128, 0.5
  %v2144 = vadd.f32 %v2129, 0.5
  %v2145 = vadd.f32 %v2130, 0.5
  %v2146 = vadd.f32 %v2131, 0.5
  %v2147 = vadd.f32 %v2132, 0.5
  %v2148 = vmul.f32 %v1970, %v2133
  %v2149 = vmul.f32 %v1972, %v2134
  %v2150 = vmul.f32 %v2065, %v2135
  %v2151 = vmul.f32 %v1976, %v2136
  %v2152 = vmul.f32 %v1978, %v2137
  %v2153 = vmul.f32 %v2070, %v2138
  %v2154 = vmul.f32 %v1982, %v2139
  %v2155 = vmul.f32 %v1984, %v2140
  %v2156 = vmul.f32 %v2075, %v2141
  %v2157 = vmul.f32 %v1988, %v2142
  %v2158 = vmul.f32 %v1990, %v2143
  %v2159 = vmul.f32 %v2080, %v2144
  %v2160 = vmul.f32 %v1994, %v2145
  %v2161 = vmul.f32 %v1996, %v2146
  %v2162 = vmul.f32 %v2085, %v2147
  %s2163 = scalar_lea.vmem %s2, 240
  %v2164 = vld [vmem:[%s2163] sm:$0xff]
  %v2165 = vld [vmem:[%s2163 + $0x8] sm:$0xff]
  %v2166 = vld [vmem:[%s2163 + $0x10] sm:$0xff]
  %v2167 = vld [vmem:[%s2163 + $0x18] sm:$0xff]
  %v2168 = vld [vmem:[%s2163 + $0x20] sm:$0xff]
  %s2169 = scalar_lea.vmem %s4, 280
  %v2170 = vld [vmem:[%s2169] sm:$0xff]
  %v2171 = vld [vmem:[%s2169 + $0x8] sm:$0xff]
  %v2172 = vld [vmem:[%s2169 + $0x10] sm:$0xff]
  %v2173 = vld [vmem:[%s2169 + $0x18] sm:$0xff]
  %v2174 = vld [vmem:[%s2169 + $0x20] sm:$0xff]
  %2176 = vset.pattern.permute.xlu0 0
  %2177 = vperm.xlu0 %2176, %v2170
  %v2178 = vpop.permute.xlu0 %2177
  %2181 = vset.pattern.permute.xlu0 0
  %2182 = vperm.xlu0 %2181, %v2171
  %v2183 = vpop.permute.xlu0 %2182
  %2186 = vset.pattern.permute.xlu0 0
  %2187 = vperm.xlu0 %2186, %v2172
  %v2188 = vpop.permute.xlu0 %2187
  %2191 = vset.pattern.permute.xlu0 0
  %2192 = vperm.xlu0 %2191, %v2173
  %v2193 = vpop.permute.xlu0 %2192
  %2196 = vset.pattern.permute.xlu0 0
  %2197 = vperm.xlu0 %2196, %v2174
  %v2198 = vpop.permute.xlu0 %2197
  %v2201 = vsel %vm327, %v2164, 0
  %v2204 = vsel %vm327, %v2165, 0
  %v2207 = vsel %vm327, %v2166, 0
  %v2210 = vsel %vm327, %v2167, 0
  %v2213 = vsel %vm327, %v2168, 0
  %2215 = vmatprep.subr.mxu0 0.0
  %2216 = vmatpush1.msra.mxu0 0.0
  %2217 = vmatprep.subr.mxu0 0.0
  %2218 = vmatpush1.msra.mxu0 0.0
  %2219 = vmatprep.subr.mxu0 0.0
  %2220 = vmatpush1.msra.mxu0 0.0
  %2221 = vmatprep.subr.mxu0 0.0
  %2222 = vmatpush1.msra.mxu0 0.0
  %2223 = vmatprep.subr.mxu0 0.0
  %2224 = vmatpush1.msra.mxu0 0.0
  %2225 = vmatprep.subr.mxu0 0.0
  %2226 = vmatpush1.msra.mxu0 0.0
  %2227 = vmatprep.subr.mxu0 0.0
  %2228 = vmatpush1.msra.mxu0 0.0
  %2229 = vmatprep.subr.mxu0 0.0
  %2230 = vmatpush1.msra.mxu0 0.0
  %2231 = vmatprep.subr.mxu0 0.0
  %2232 = vmatpush1.msra.mxu0 0.0
  %2233 = vmatprep.subr.mxu0 0.0
  %2234 = vmatpush1.msra.mxu0 0.0
  %2235 = vmatprep.subr.mxu0 0.0
  %2236 = vmatpush1.msra.mxu0 0.0
  %2237 = vmatprep.subr.mxu0 %v2161
  %2238 = vmatpush1.msra.mxu0 %v2160
  %2239 = vmatprep.subr.mxu0 %v2158
  %2240 = vmatpush1.msra.mxu0 %v2157
  %2241 = vmatprep.subr.mxu0 %v2155
  %2242 = vmatpush1.msra.mxu0 %v2154
  %2243 = vmatprep.subr.mxu0 %v2152
  %2244 = vmatpush1.msra.mxu0 %v2151
  %2245 = vmatprep.subr.mxu0 %v2149
  %2246 = vmatpush1.msra.mxu0 %v2148
  %2247 = vmatprep.subr.mxu0 0.0
  %2248 = vmatpush2.msra.mxu0 0.0
  %2249 = vmatprep.subr.mxu0 0.0
  %2250 = vmatpush2.msra.mxu0 0.0
  %2251 = vmatprep.subr.mxu0 0.0
  %2252 = vmatpush2.msra.mxu0 0.0
  %2253 = vmatprep.subr.mxu0 0.0
  %2254 = vmatpush2.msra.mxu0 0.0
  %2255 = vmatprep.subr.mxu0 0.0
  %2256 = vmatpush2.msra.mxu0 0.0
  %2257 = vmatprep.subr.mxu0 0.0
  %2258 = vmatpush2.msra.mxu0 0.0
  %2259 = vmatprep.subr.mxu0 0.0
  %2260 = vmatpush2.msra.mxu0 0.0
  %2261 = vmatprep.subr.mxu0 0.0
  %2262 = vmatpush2.msra.mxu0 0.0
  %2263 = vmatprep.subr.mxu0 0.0
  %2264 = vmatpush2.msra.mxu0 0.0
  %2265 = vmatprep.subr.mxu0 0.0
  %2266 = vmatpush2.msra.mxu0 0.0
  %2267 = vmatprep.subr.mxu0 0.0
  %2268 = vmatpush2.msra.mxu0 0.0
  %2269 = vmatprep.subr.mxu0 0.0
  %2270 = vmatpush2.msra.mxu0 0.0
  %2271 = vmatprep.subr.mxu0 0.0
  %2272 = vmatpush2.msra.mxu0 0.0
  %2273 = vmatprep.subr.mxu0 0.0
  %2274 = vmatpush2.msra.mxu0 0.0
  %2275 = vmatprep.subr.mxu0 0.0
  %2276 = vmatpush2.msra.mxu0 0.0
  %2277 = vmatprep.subr.mxu0 0.0
  %2278 = vmatpush2.msra.mxu0 0.0
  %2279 = vmatprep.mubr.f32.mxu0 0.0
  %2280 = vmatmul.mubr.f32.gmra.mxu0 %v2201
  %v2281 = vpop.f32.mrf.mxu0
  %v2282 = vadd.f32 %v2178, %v2281
  %v2283 = vpop.f32.mrf.mxu0
  %v2284 = vadd.f32 %v2178, %v2283
  %2285 = vmatprep.mubr.f32.mxu0 0.0
  %2286 = vmatmul.mubr.f32.gmra.mxu0 %v2204
  %v2287 = vpop.f32.mrf.mxu0
  %v2288 = vadd.f32 %v2183, %v2287
  %v2289 = vpop.f32.mrf.mxu0
  %v2290 = vadd.f32 %v2183, %v2289
  %2291 = vmatprep.mubr.f32.mxu0 0.0
  %2292 = vmatmul.mubr.f32.gmra.mxu0 %v2207
  %v2293 = vpop.f32.mrf.mxu0
  %v2294 = vadd.f32 %v2188, %v2293
  %v2295 = vpop.f32.mrf.mxu0
  %v2296 = vadd.f32 %v2188, %v2295
  %2297 = vmatprep.mubr.f32.mxu0 0.0
  %2298 = vmatmul.mubr.f32.gmra.mxu0 %v2210
  %v2299 = vpop.f32.mrf.mxu0
  %v2300 = vadd.f32 %v2193, %v2299
  %v2301 = vpop.f32.mrf.mxu0
  %v2302 = vadd.f32 %v2193, %v2301
  %2303 = vmatprep.mubr.f32.mxu0 0.0
  %2304 = vmatmul.mubr.f32.gmra.mxu0 %v2213
  %v2305 = vpop.f32.mrf.mxu0
  %v2306 = vadd.f32 %v2198, %v2305
  %v2307 = vpop.f32.mrf.mxu0
  %v2308 = vadd.f32 %v2198, %v2307
  %2309 = vdwg.mxu0
  %2310 = vmatprep.subr.mxu0 0.0
  %2311 = vmatpush1.msra.mxu0 0.0
  %2312 = vmatprep.subr.mxu0 0.0
  %2313 = vmatpush1.msra.mxu0 0.0
  %2314 = vmatprep.subr.mxu0 0.0
  %2315 = vmatpush1.msra.mxu0 0.0
  %2316 = vmatprep.subr.mxu0 0.0
  %2317 = vmatpush1.msra.mxu0 0.0
  %2318 = vmatprep.subr.mxu0 0.0
  %2319 = vmatpush1.msra.mxu0 0.0
  %2320 = vmatprep.subr.mxu0 0.0
  %2321 = vmatpush1.msra.mxu0 0.0
  %2322 = vmatprep.subr.mxu0 0.0
  %2323 = vmatpush1.msra.mxu0 0.0
  %2324 = vmatprep.subr.mxu0 0.0
  %2325 = vmatpush1.msra.mxu0 0.0
  %2326 = vmatprep.subr.mxu0 0.0
  %2327 = vmatpush1.msra.mxu0 0.0
  %2328 = vmatprep.subr.mxu0 0.0
  %2329 = vmatpush1.msra.mxu0 0.0
  %2330 = vmatprep.subr.mxu0 0.0
  %2331 = vmatpush1.msra.mxu0 0.0
  %2332 = vmatprep.subr.mxu0 0.0
  %2333 = vmatpush1.msra.mxu0 %v2162
  %2334 = vmatprep.subr.mxu0 0.0
  %2335 = vmatpush1.msra.mxu0 %v2159
  %2336 = vmatprep.subr.mxu0 0.0
  %2337 = vmatpush1.msra.mxu0 %v2156
  %2338 = vmatprep.subr.mxu0 0.0
  %2339 = vmatpush1.msra.mxu0 %v2153
  %2340 = vmatprep.subr.mxu0 0.0
  %2341 = vmatpush1.msra.mxu0 %v2150
  %2342 = vmatprep.subr.mxu0 0.0
  %2343 = vmatpush2.msra.mxu0 0.0
  %2344 = vmatprep.subr.mxu0 0.0
  %2345 = vmatpush2.msra.mxu0 0.0
  %2346 = vmatprep.subr.mxu0 0.0
  %2347 = vmatpush2.msra.mxu0 0.0
  %2348 = vmatprep.subr.mxu0 0.0
  %2349 = vmatpush2.msra.mxu0 0.0
  %2350 = vmatprep.subr.mxu0 0.0
  %2351 = vmatpush2.msra.mxu0 0.0
  %2352 = vmatprep.subr.mxu0 0.0
  %2353 = vmatpush2.msra.mxu0 0.0
  %2354 = vmatprep.subr.mxu0 0.0
  %2355 = vmatpush2.msra.mxu0 0.0
  %2356 = vmatprep.subr.mxu0 0.0
  %2357 = vmatpush2.msra.mxu0 0.0
  %2358 = vmatprep.subr.mxu0 0.0
  %2359 = vmatpush2.msra.mxu0 0.0
  %2360 = vmatprep.subr.mxu0 0.0
  %2361 = vmatpush2.msra.mxu0 0.0
  %2362 = vmatprep.subr.mxu0 0.0
  %2363 = vmatpush2.msra.mxu0 0.0
  %2364 = vmatprep.subr.mxu0 0.0
  %2365 = vmatpush2.msra.mxu0 0.0
  %2366 = vmatprep.subr.mxu0 0.0
  %2367 = vmatpush2.msra.mxu0 0.0
  %2368 = vmatprep.subr.mxu0 0.0
  %2369 = vmatpush2.msra.mxu0 0.0
  %2370 = vmatprep.subr.mxu0 0.0
  %2371 = vmatpush2.msra.mxu0 0.0
  %2372 = vmatprep.subr.mxu0 0.0
  %2373 = vmatpush2.msra.mxu0 0.0
  %2374 = vmatprep.mubr.f32.mxu0 0.0
  %2375 = vmatmul.mubr.f32.gmra.mxu0 %v2201
  %v2376 = vpop.f32.mrf.mxu0
  %v2377 = vadd.f32 %v2178, %v2376
  %v2378 = vpop.f32.mrf.mxu0
  %2379 = vmatprep.mubr.f32.mxu0 0.0
  %2380 = vmatmul.mubr.f32.gmra.mxu0 %v2204
  %v2381 = vpop.f32.mrf.mxu0
  %v2382 = vadd.f32 %v2183, %v2381
  %v2383 = vpop.f32.mrf.mxu0
  %2384 = vmatprep.mubr.f32.mxu0 0.0
  %2385 = vmatmul.mubr.f32.gmra.mxu0 %v2207
  %v2386 = vpop.f32.mrf.mxu0
  %v2387 = vadd.f32 %v2188, %v2386
  %v2388 = vpop.f32.mrf.mxu0
  %2389 = vmatprep.mubr.f32.mxu0 0.0
  %2390 = vmatmul.mubr.f32.gmra.mxu0 %v2210
  %v2391 = vpop.f32.mrf.mxu0
  %v2392 = vadd.f32 %v2193, %v2391
  %v2393 = vpop.f32.mrf.mxu0
  %2394 = vmatprep.mubr.f32.mxu0 0.0
  %2395 = vmatmul.mubr.f32.gmra.mxu0 %v2213
  %v2396 = vpop.f32.mrf.mxu0
  %v2397 = vadd.f32 %v2198, %v2396
  %v2398 = vpop.f32.mrf.mxu0
  %2399 = vdwg.mxu0
  %v2400 = vmul.f32 %v2282, 0.5
  %v2401 = vmul.f32 %v2284, 0.5
  %v2402 = vmul.f32 %v2377, 0.5
  %v2403 = vmul.f32 %v2288, 0.5
  %v2404 = vmul.f32 %v2290, 0.5
  %v2405 = vmul.f32 %v2382, 0.5
  %v2406 = vmul.f32 %v2294, 0.5
  %v2407 = vmul.f32 %v2296, 0.5
  %v2408 = vmul.f32 %v2387, 0.5
  %v2409 = vmul.f32 %v2300, 0.5
  %v2410 = vmul.f32 %v2302, 0.5
  %v2411 = vmul.f32 %v2392, 0.5
  %v2412 = vmul.f32 %v2306, 0.5
  %v2413 = vmul.f32 %v2308, 0.5
  %v2414 = vmul.f32 %v2397, 0.5
  %v2415 = vtanh.pop %v2400
  %v2416 = vtanh.pop %v2401
  %v2417 = vtanh.pop %v2402
  %v2418 = vtanh.pop %v2403
  %v2419 = vtanh.pop %v2404
  %v2420 = vtanh.pop %v2405
  %v2421 = vtanh.pop %v2406
  %v2422 = vtanh.pop %v2407
  %v2423 = vtanh.pop %v2408
  %v2424 = vtanh.pop %v2409
  %v2425 = vtanh.pop %v2410
  %v2426 = vtanh.pop %v2411
  %v2427 = vtanh.pop %v2412
  %v2428 = vtanh.pop %v2413
  %v2429 = vtanh.pop %v2414
  %v2430 = vmul.f32 %v2415, 0.5
  %v2431 = vmul.f32 %v2416, 0.5
  %v2432 = vmul.f32 %v2417, 0.5
  %v2433 = vmul.f32 %v2418, 0.5
  %v2434 = vmul.f32 %v2419, 0.5
  %v2435 = vmul.f32 %v2420, 0.5
  %v2436 = vmul.f32 %v2421, 0.5
  %v2437 = vmul.f32 %v2422, 0.5
  %v2438 = vmul.f32 %v2423, 0.5
  %v2439 = vmul.f32 %v2424, 0.5
  %v2440 = vmul.f32 %v2425, 0.5
  %v2441 = vmul.f32 %v2426, 0.5
  %v2442 = vmul.f32 %v2427, 0.5
  %v2443 = vmul.f32 %v2428, 0.5
  %v2444 = vmul.f32 %v2429, 0.5
  %v2445 = vadd.f32 %v2430, 0.5
  %v2446 = vadd.f32 %v2431, 0.5
  %v2447 = vadd.f32 %v2432, 0.5
  %v2448 = vadd.f32 %v2433, 0.5
  %v2449 = vadd.f32 %v2434, 0.5
  %v2450 = vadd.f32 %v2435, 0.5
  %v2451 = vadd.f32 %v2436, 0.5
  %v2452 = vadd.f32 %v2437, 0.5
  %v2453 = vadd.f32 %v2438, 0.5
  %v2454 = vadd.f32 %v2439, 0.5
  %v2455 = vadd.f32 %v2440, 0.5
  %v2456 = vadd.f32 %v2441, 0.5
  %v2457 = vadd.f32 %v2442, 0.5
  %v2458 = vadd.f32 %v2443, 0.5
  %v2459 = vadd.f32 %v2444, 0.5
  %v2460 = vmul.f32 %v2282, %v2445
  %v2461 = vmul.f32 %v2284, %v2446
  %v2462 = vmul.f32 %v2377, %v2447
  %v2463 = vmul.f32 %v2288, %v2448
  %v2464 = vmul.f32 %v2290, %v2449
  %v2465 = vmul.f32 %v2382, %v2450
  %v2466 = vmul.f32 %v2294, %v2451
  %v2467 = vmul.f32 %v2296, %v2452
  %v2468 = vmul.f32 %v2387, %v2453
  %v2469 = vmul.f32 %v2300, %v2454
  %v2470 = vmul.f32 %v2302, %v2455
  %v2471 = vmul.f32 %v2392, %v2456
  %v2472 = vmul.f32 %v2306, %v2457
  %v2473 = vmul.f32 %v2308, %v2458
  %v2474 = vmul.f32 %v2397, %v2459
  %s2475 = scalar_lea.vmem %s2, 280
  %v2476 = vld [vmem:[%s2475] sm:$0xff]
  %v2477 = vld [vmem:[%s2475 + $0x8] sm:$0xff]
  %v2478 = vld [vmem:[%s2475 + $0x10] sm:$0xff]
  %v2479 = vld [vmem:[%s2475 + $0x18] sm:$0xff]
  %v2480 = vld [vmem:[%s2475 + $0x20] sm:$0xff]
  %s2481 = scalar_lea.vmem %s4, 320
  %v2482 = vld [vmem:[%s2481] sm:$0xff]
  %v2483 = vld [vmem:[%s2481 + $0x8] sm:$0xff]
  %v2484 = vld [vmem:[%s2481 + $0x10] sm:$0xff]
  %v2485 = vld [vmem:[%s2481 + $0x18] sm:$0xff]
  %v2486 = vld [vmem:[%s2481 + $0x20] sm:$0xff]
  %2488 = vset.pattern.permute.xlu0 0
  %2489 = vperm.xlu0 %2488, %v2482
  %v2490 = vpop.permute.xlu0 %2489
  %2493 = vset.pattern.permute.xlu0 0
  %2494 = vperm.xlu0 %2493, %v2483
  %v2495 = vpop.permute.xlu0 %2494
  %2498 = vset.pattern.permute.xlu0 0
  %2499 = vperm.xlu0 %2498, %v2484
  %v2500 = vpop.permute.xlu0 %2499
  %2503 = vset.pattern.permute.xlu0 0
  %2504 = vperm.xlu0 %2503, %v2485
  %v2505 = vpop.permute.xlu0 %2504
  %2508 = vset.pattern.permute.xlu0 0
  %2509 = vperm.xlu0 %2508, %v2486
  %v2510 = vpop.permute.xlu0 %2509
  %v2513 = vsel %vm327, %v2476, 0
  %v2516 = vsel %vm327, %v2477, 0
  %v2519 = vsel %vm327, %v2478, 0
  %v2522 = vsel %vm327, %v2479, 0
  %v2525 = vsel %vm327, %v2480, 0
  %2527 = vmatprep.subr.mxu0 0.0
  %2528 = vmatpush1.msra.mxu0 0.0
  %2529 = vmatprep.subr.mxu0 0.0
  %2530 = vmatpush1.msra.mxu0 0.0
  %2531 = vmatprep.subr.mxu0 0.0
  %2532 = vmatpush1.msra.mxu0 0.0
  %2533 = vmatprep.subr.mxu0 0.0
  %2534 = vmatpush1.msra.mxu0 0.0
  %2535 = vmatprep.subr.mxu0 0.0
  %2536 = vmatpush1.msra.mxu0 0.0
  %2537 = vmatprep.subr.mxu0 0.0
  %2538 = vmatpush1.msra.mxu0 0.0
  %2539 = vmatprep.subr.mxu0 0.0
  %2540 = vmatpush1.msra.mxu0 0.0
  %2541 = vmatprep.subr.mxu0 0.0
  %2542 = vmatpush1.msra.mxu0 0.0
  %2543 = vmatprep.subr.mxu0 0.0
  %2544 = vmatpush1.msra.mxu0 0.0
  %2545 = vmatprep.subr.mxu0 0.0
  %2546 = vmatpush1.msra.mxu0 0.0
  %2547 = vmatprep.subr.mxu0 0.0
  %2548 = vmatpush1.msra.mxu0 0.0
  %2549 = vmatprep.subr.mxu0 %v2473
  %2550 = vmatpush1.msra.mxu0 %v2472
  %2551 = vmatprep.subr.mxu0 %v2470
  %2552 = vmatpush1.msra.mxu0 %v2469
  %2553 = vmatprep.subr.mxu0 %v2467
  %2554 = vmatpush1.msra.mxu0 %v2466
  %2555 = vmatprep.subr.mxu0 %v2464
  %2556 = vmatpush1.msra.mxu0 %v2463
  %2557 = vmatprep.subr.mxu0 %v2461
  %2558 = vmatpush1.msra.mxu0 %v2460
  %2559 = vmatprep.subr.mxu0 0.0
  %2560 = vmatpush2.msra.mxu0 0.0
  %2561 = vmatprep.subr.mxu0 0.0
  %2562 = vmatpush2.msra.mxu0 0.0
  %2563 = vmatprep.subr.mxu0 0.0
  %2564 = vmatpush2.msra.mxu0 0.0
  %2565 = vmatprep.subr.mxu0 0.0
  %2566 = vmatpush2.msra.mxu0 0.0
  %2567 = vmatprep.subr.mxu0 0.0
  %2568 = vmatpush2.msra.mxu0 0.0
  %2569 = vmatprep.subr.mxu0 0.0
  %2570 = vmatpush2.msra.mxu0 0.0
  %2571 = vmatprep.subr.mxu0 0.0
  %2572 = vmatpush2.msra.mxu0 0.0
  %2573 = vmatprep.subr.mxu0 0.0
  %2574 = vmatpush2.msra.mxu0 0.0
  %2575 = vmatprep.subr.mxu0 0.0
  %2576 = vmatpush2.msra.mxu0 0.0
  %2577 = vmatprep.subr.mxu0 0.0
  %2578 = vmatpush2.msra.mxu0 0.0
  %2579 = vmatprep.subr.mxu0 0.0
  %2580 = vmatpush2.msra.mxu0 0.0
  %2581 = vmatprep.subr.mxu0 0.0
  %2582 = vmatpush2.msra.mxu0 0.0
  %2583 = vmatprep.subr.mxu0 0.0
  %2584 = vmatpush2.msra.mxu0 0.0
  %2585 = vmatprep.subr.mxu0 0.0
  %2586 = vmatpush2.msra.mxu0 0.0
  %2587 = vmatprep.subr.mxu0 0.0
  %2588 = vmatpush2.msra.mxu0 0.0
  %2589 = vmatprep.subr.mxu0 0.0
  %2590 = vmatpush2.msra.mxu0 0.0
  %2591 = vmatprep.mubr.f32.mxu0 0.0
  %2592 = vmatmul.mubr.f32.gmra.mxu0 %v2513
  %v2593 = vpop.f32.mrf.mxu0
  %v2594 = vadd.f32 %v2490, %v2593
  %v2595 = vpop.f32.mrf.mxu0
  %v2596 = vadd.f32 %v2490, %v2595
  %2597 = vmatprep.mubr.f32.mxu0 0.0
  %2598 = vmatmul.mubr.f32.gmra.mxu0 %v2516
  %v2599 = vpop.f32.mrf.mxu0
  %v2600 = vadd.f32 %v2495, %v2599
  %v2601 = vpop.f32.mrf.mxu0
  %v2602 = vadd.f32 %v2495, %v2601
  %2603 = vmatprep.mubr.f32.mxu0 0.0
  %2604 = vmatmul.mubr.f32.gmra.mxu0 %v2519
  %v2605 = vpop.f32.mrf.mxu0
  %v2606 = vadd.f32 %v2500, %v2605
  %v2607 = vpop.f32.mrf.mxu0
  %v2608 = vadd.f32 %v2500, %v2607
  %2609 = vmatprep.mubr.f32.mxu0 0.0
  %2610 = vmatmul.mubr.f32.gmra.mxu0 %v2522
  %v2611 = vpop.f32.mrf.mxu0
  %v2612 = vadd.f32 %v2505, %v2611
  %v2613 = vpop.f32.mrf.mxu0
  %v2614 = vadd.f32 %v2505, %v2613
  %2615 = vmatprep.mubr.f32.mxu0 0.0
  %2616 = vmatmul.mubr.f32.gmra.mxu0 %v2525
  %v2617 = vpop.f32.mrf.mxu0
  %v2618 = vadd.f32 %v2510, %v2617
  %v2619 = vpop.f32.mrf.mxu0
  %v2620 = vadd.f32 %v2510, %v2619
  %2621 = vdwg.mxu0
  %2622 = vmatprep.subr.mxu0 0.0
  %2623 = vmatpush1.msra.mxu0 0.0
  %2624 = vmatprep.subr.mxu0 0.0
  %2625 = vmatpush1.msra.mxu0 0.0
  %2626 = vmatprep.subr.mxu0 0.0
  %2627 = vmatpush1.msra.mxu0 0.0
  %2628 = vmatprep.subr.mxu0 0.0
  %2629 = vmatpush1.msra.mxu0 0.0
  %2630 = vmatprep.subr.mxu0 0.0
  %2631 = vmatpush1.msra.mxu0 0.0
  %2632 = vmatprep.subr.mxu0 0.0
  %2633 = vmatpush1.msra.mxu0 0.0
  %2634 = vmatprep.subr.mxu0 0.0
  %2635 = vmatpush1.msra.mxu0 0.0
  %2636 = vmatprep.subr.mxu0 0.0
  %2637 = vmatpush1.msra.mxu0 0.0
  %2638 = vmatprep.subr.mxu0 0.0
  %2639 = vmatpush1.msra.mxu0 0.0
  %2640 = vmatprep.subr.mxu0 0.0
  %2641 = vmatpush1.msra.mxu0 0.0
  %2642 = vmatprep.subr.mxu0 0.0
  %2643 = vmatpush1.msra.mxu0 0.0
  %2644 = vmatprep.subr.mxu0 0.0
  %2645 = vmatpush1.msra.mxu0 %v2474
  %2646 = vmatprep.subr.mxu0 0.0
  %2647 = vmatpush1.msra.mxu0 %v2471
  %2648 = vmatprep.subr.mxu0 0.0
  %2649 = vmatpush1.msra.mxu0 %v2468
  %2650 = vmatprep.subr.mxu0 0.0
  %2651 = vmatpush1.msra.mxu0 %v2465
  %2652 = vmatprep.subr.mxu0 0.0
  %2653 = vmatpush1.msra.mxu0 %v2462
  %2654 = vmatprep.subr.mxu0 0.0
  %2655 = vmatpush2.msra.mxu0 0.0
  %2656 = vmatprep.subr.mxu0 0.0
  %2657 = vmatpush2.msra.mxu0 0.0
  %2658 = vmatprep.subr.mxu0 0.0
  %2659 = vmatpush2.msra.mxu0 0.0
  %2660 = vmatprep.subr.mxu0 0.0
  %2661 = vmatpush2.msra.mxu0 0.0
  %2662 = vmatprep.subr.mxu0 0.0
  %2663 = vmatpush2.msra.mxu0 0.0
  %2664 = vmatprep.subr.mxu0 0.0
  %2665 = vmatpush2.msra.mxu0 0.0
  %2666 = vmatprep.subr.mxu0 0.0
  %2667 = vmatpush2.msra.mxu0 0.0
  %2668 = vmatprep.subr.mxu0 0.0
  %2669 = vmatpush2.msra.mxu0 0.0
  %2670 = vmatprep.subr.mxu0 0.0
  %2671 = vmatpush2.msra.mxu0 0.0
  %2672 = vmatprep.subr.mxu0 0.0
  %2673 = vmatpush2.msra.mxu0 0.0
  %2674 = vmatprep.subr.mxu0 0.0
  %2675 = vmatpush2.msra.mxu0 0.0
  %2676 = vmatprep.subr.mxu0 0.0
  %2677 = vmatpush2.msra.mxu0 0.0
  %2678 = vmatprep.subr.mxu0 0.0
  %2679 = vmatpush2.msra.mxu0 0.0
  %2680 = vmatprep.subr.mxu0 0.0
  %2681 = vmatpush2.msra.mxu0 0.0
  %2682 = vmatprep.subr.mxu0 0.0
  %2683 = vmatpush2.msra.mxu0 0.0
  %2684 = vmatprep.subr.mxu0 0.0
  %2685 = vmatpush2.msra.mxu0 0.0
  %2686 = vmatprep.mubr.f32.mxu0 0.0
  %2687 = vmatmul.mubr.f32.gmra.mxu0 %v2513
  %v2688 = vpop.f32.mrf.mxu0
  %v2689 = vadd.f32 %v2490, %v2688
  %v2690 = vpop.f32.mrf.mxu0
  %2691 = vmatprep.mubr.f32.mxu0 0.0
  %2692 = vmatmul.mubr.f32.gmra.mxu0 %v2516
  %v2693 = vpop.f32.mrf.mxu0
  %v2694 = vadd.f32 %v2495, %v2693
  %v2695 = vpop.f32.mrf.mxu0
  %2696 = vmatprep.mubr.f32.mxu0 0.0
  %2697 = vmatmul.mubr.f32.gmra.mxu0 %v2519
  %v2698 = vpop.f32.mrf.mxu0
  %v2699 = vadd.f32 %v2500, %v2698
  %v2700 = vpop.f32.mrf.mxu0
  %2701 = vmatprep.mubr.f32.mxu0 0.0
  %2702 = vmatmul.mubr.f32.gmra.mxu0 %v2522
  %v2703 = vpop.f32.mrf.mxu0
  %v2704 = vadd.f32 %v2505, %v2703
  %v2705 = vpop.f32.mrf.mxu0
  %2706 = vmatprep.mubr.f32.mxu0 0.0
  %2707 = vmatmul.mubr.f32.gmra.mxu0 %v2525
  %v2708 = vpop.f32.mrf.mxu0
  %v2709 = vadd.f32 %v2510, %v2708
  %v2710 = vpop.f32.mrf.mxu0
  %2711 = vdwg.mxu0
  %v2712 = vmul.f32 %v2594, 0.5
  %v2713 = vmul.f32 %v2596, 0.5
  %v2714 = vmul.f32 %v2689, 0.5
  %v2715 = vmul.f32 %v2600, 0.5
  %v2716 = vmul.f32 %v2602, 0.5
  %v2717 = vmul.f32 %v2694, 0.5
  %v2718 = vmul.f32 %v2606, 0.5
  %v2719 = vmul.f32 %v2608, 0.5
  %v2720 = vmul.f32 %v2699, 0.5
  %v2721 = vmul.f32 %v2612, 0.5
  %v2722 = vmul.f32 %v2614, 0.5
  %v2723 = vmul.f32 %v2704, 0.5
  %v2724 = vmul.f32 %v2618, 0.5
  %v2725 = vmul.f32 %v2620, 0.5
  %v2726 = vmul.f32 %v2709, 0.5
  %v2727 = vtanh.pop %v2712
  %v2728 = vtanh.pop %v2713
  %v2729 = vtanh.pop %v2714
  %v2730 = vtanh.pop %v2715
  %v2731 = vtanh.pop %v2716
  %v2732 = vtanh.pop %v2717
  %v2733 = vtanh.pop %v2718
  %v2734 = vtanh.pop %v2719
  %v2735 = vtanh.pop %v2720
  %v2736 = vtanh.pop %v2721
  %v2737 = vtanh.pop %v2722
  %v2738 = vtanh.pop %v2723
  %v2739 = vtanh.pop %v2724
  %v2740 = vtanh.pop %v2725
  %v2741 = vtanh.pop %v2726
  %v2742 = vmul.f32 %v2727, 0.5
  %v2743 = vmul.f32 %v2728, 0.5
  %v2744 = vmul.f32 %v2729, 0.5
  %v2745 = vmul.f32 %v2730, 0.5
  %v2746 = vmul.f32 %v2731, 0.5
  %v2747 = vmul.f32 %v2732, 0.5
  %v2748 = vmul.f32 %v2733, 0.5
  %v2749 = vmul.f32 %v2734, 0.5
  %v2750 = vmul.f32 %v2735, 0.5
  %v2751 = vmul.f32 %v2736, 0.5
  %v2752 = vmul.f32 %v2737, 0.5
  %v2753 = vmul.f32 %v2738, 0.5
  %v2754 = vmul.f32 %v2739, 0.5
  %v2755 = vmul.f32 %v2740, 0.5
  %v2756 = vmul.f32 %v2741, 0.5
  %v2757 = vadd.f32 %v2742, 0.5
  %v2758 = vadd.f32 %v2743, 0.5
  %v2759 = vadd.f32 %v2744, 0.5
  %v2760 = vadd.f32 %v2745, 0.5
  %v2761 = vadd.f32 %v2746, 0.5
  %v2762 = vadd.f32 %v2747, 0.5
  %v2763 = vadd.f32 %v2748, 0.5
  %v2764 = vadd.f32 %v2749, 0.5
  %v2765 = vadd.f32 %v2750, 0.5
  %v2766 = vadd.f32 %v2751, 0.5
  %v2767 = vadd.f32 %v2752, 0.5
  %v2768 = vadd.f32 %v2753, 0.5
  %v2769 = vadd.f32 %v2754, 0.5
  %v2770 = vadd.f32 %v2755, 0.5
  %v2771 = vadd.f32 %v2756, 0.5
  %v2772 = vmul.f32 %v2594, %v2757
  %v2773 = vmul.f32 %v2596, %v2758
  %v2774 = vmul.f32 %v2689, %v2759
  %v2775 = vmul.f32 %v2600, %v2760
  %v2776 = vmul.f32 %v2602, %v2761
  %v2777 = vmul.f32 %v2694, %v2762
  %v2778 = vmul.f32 %v2606, %v2763
  %v2779 = vmul.f32 %v2608, %v2764
  %v2780 = vmul.f32 %v2699, %v2765
  %v2781 = vmul.f32 %v2612, %v2766
  %v2782 = vmul.f32 %v2614, %v2767
  %v2783 = vmul.f32 %v2704, %v2768
  %v2784 = vmul.f32 %v2618, %v2769
  %v2785 = vmul.f32 %v2620, %v2770
  %v2786 = vmul.f32 %v2709, %v2771
  %v2787 = vld [vmem:[%s3] sm:$0xff]
  %v2788 = vld [vmem:[%s3 + $0x8] sm:$0xff]
  %v2789 = vld [vmem:[%s3 + $0x10] sm:$0xff]
  %v2790 = vld [vmem:[%s3 + $0x18] sm:$0xff]
  %v2791 = vld [vmem:[%s3 + $0x20] sm:$0xff]
  %2793 = vset.pattern.permute.xlu0 0
  %2794 = vperm.xlu0 %2793, %v2787
  %v2795 = vpop.permute.xlu0 %2794
  %2798 = vset.pattern.permute.xlu0 0
  %2799 = vperm.xlu0 %2798, %v2788
  %v2800 = vpop.permute.xlu0 %2799
  %2803 = vset.pattern.permute.xlu0 0
  %2804 = vperm.xlu0 %2803, %v2789
  %v2805 = vpop.permute.xlu0 %2804
  %2808 = vset.pattern.permute.xlu0 0
  %2809 = vperm.xlu0 %2808, %v2790
  %v2810 = vpop.permute.xlu0 %2809
  %2813 = vset.pattern.permute.xlu0 0
  %2814 = vperm.xlu0 %2813, %v2791
  %v2815 = vpop.permute.xlu0 %2814
  %v2817 = vmul.f32 %v2772, %v2795
  %v2818 = vmul.f32 %v2773, %v2795
  %v2819 = vmul.f32 %v2774, %v2795
  %v2820 = vmul.f32 %v2775, %v2800
  %v2821 = vmul.f32 %v2776, %v2800
  %v2822 = vmul.f32 %v2777, %v2800
  %v2823 = vmul.f32 %v2778, %v2805
  %v2824 = vmul.f32 %v2779, %v2805
  %v2825 = vmul.f32 %v2780, %v2805
  %v2826 = vmul.f32 %v2781, %v2810
  %v2827 = vmul.f32 %v2782, %v2810
  %v2828 = vmul.f32 %v2783, %v2810
  %v2829 = vmul.f32 %v2784, %v2815
  %v2830 = vmul.f32 %v2785, %v2815
  %v2831 = vmul.f32 %v2786, %v2815
  %v2832 = vadd.f32 %v2817, %v2820
  %v2833 = vadd.f32 %v2832, %v2823
  %v2834 = vadd.f32 %v2833, %v2826
  %v2835 = vadd.f32 %v2834, %v2829
  %v2836 = vrot.slane %v2835, 4
  %v2837 = vadd.f32 %v2835, %v2836
  %v2838 = vrot.slane %v2837, 2
  %v2839 = vadd.f32 %v2837, %v2838
  %v2840 = vrot.slane %v2839, 1
  %v2841 = vadd.f32 %v2839, %v2840
  %v2842 = vadd.f32 %v2818, %v2821
  %v2843 = vadd.f32 %v2842, %v2824
  %v2844 = vadd.f32 %v2843, %v2827
  %v2845 = vadd.f32 %v2844, %v2830
  %v2846 = vrot.slane %v2845, 4
  %v2847 = vadd.f32 %v2845, %v2846
  %v2848 = vrot.slane %v2847, 2
  %v2849 = vadd.f32 %v2847, %v2848
  %v2850 = vrot.slane %v2849, 1
  %v2851 = vadd.f32 %v2849, %v2850
  %v2852 = vadd.f32 %v2819, %v2822
  %v2853 = vadd.f32 %v2852, %v2825
  %v2854 = vadd.f32 %v2853, %v2828
  %v2855 = vadd.f32 %v2854, %v2831
  %v2856 = vrot.slane %v2855, 4
  %v2857 = vadd.f32 %v2855, %v2856
  %v2858 = vrot.slane %v2857, 2
  %v2859 = vadd.f32 %v2857, %v2858
  %v2860 = vrot.slane %v2859, 1
  %v2861 = vadd.f32 %v2859, %v2860
  %s2862 = scalar_lea.vmem %s4, 360
  %v2863 = vld [vmem:[%s2862] sm:$0x1]
  %2865 = vset.pattern.permute.xlu0 0
  %2866 = vperm.xlu0 %2865, %v2863
  %v2867 = vpop.permute.xlu0 %2866
  %v2869 = vadd.f32 %v2841, %v2867
  %v2870 = vadd.f32 %v2851, %v2867
  %v2871 = vadd.f32 %v2861, %v2867
  %v2875 = vcombine.low %v2869, %v2870
  %v2877 = vunpack.c.l.s4 1966171168
  %v2878 = vunpack.c.0.s8 %v2877
  %v2879 = vlaneseq
  %v2880 = vshrl.u32 %v2879, 7
  %v2881 = vsub.s32 %v2878, %v2880
  %v2882 = vrot.slane %v2875, %v2881
  %v2884 = vunpack.c.l.s4 1966171168
  %v2885 = vunpack.c.0.s8 %v2884
  %v2886 = vlaneseq
  %v2887 = vshrl.u32 %v2886, 7
  %v2888 = vsub.s32 %v2885, %v2887
  %v2889 = vrot.slane %v2871, %v2888
  %v2890 = vcombine.low %v2882, %v2889
  %v2892 = vunpack.c.l.s4 1966171168
  %v2893 = vunpack.c.0.s8 %v2892
  %v2894 = vlaneseq
  %v2895 = vshrl.u32 %v2894, 7
  %v2896 = vsub.s32 %v2893, %v2895
  %v2897 = vrot.slane %v2890, %v2896
  %v2899 = vlaneseq
  %vm2900 = vcmp.ge.s32.totalorder %v2899, 0
  %vm2901 = vcmp.lt.s32.totalorder %v2899, 384
  %vm2902 = vmand %vm2900, %vm2901
  %2903 = vst.msk [vmem:[%s5] sm:$0x7] %vm2902, %v2897
  // Predicated region
  $region22: #{pinn_t_forward.1} parent=0 // pred_check
    _
  $region23: #{pinn_t_forward.1} parent=0 // pred_check_branch
    %2905 = sbr.rel (0) target = $region25
  $region24: #{pinn_t_forward.1} parent=0 // pred_region
    _
  $region25: #{pinn_t_forward.1} parent=0 // pred_fallthru
    _
  // Predicated region
  $region26: #{pinn_t_forward.1} parent=0 // pred_check
    _
  $region27: #{pinn_t_forward.1} parent=0 // pred_check_branch
    %2907 = sbr.rel (0) target = $region29
  $region28: #{pinn_t_forward.1} parent=0 // pred_region
    _
  $region29: #{pinn_t_forward.1} parent=0 // pred_fallthru
    _

</llo_original>
